<compile_context>
chip_gen: v7x
topology: tpu7x:2x2x1
jax: 0.10.0
libtpu: 0.0.40
codegen_flags: <defaults>
</compile_context>

<pallas_src>
import functools

import jax
import jax.numpy as jnp
from jax.experimental import pallas as pl
from jax.experimental.pallas import tpu as pltpu

_HIGHEST = jax.lax.Precision.HIGHEST


def _decoder_kernel(mu_flat_ref, mu3_ref, wt_ref, b_ref, ops_ref, adj_ref, *, B, N):
    mu_flat = mu_flat_ref[...]                      # (B*N, Do), f32 already

    # ---- fc: single 2-D MXU matmul over all B*N rows -----------------------
    # Weight is pre-transposed to (Do, Dp) and zero-padded to 128 lanes in the
    # wrapper, so the contraction sits on lanes and the result is lane-dense.
    z = jnp.dot(mu_flat, wt_ref[...],
                precision=_HIGHEST,
                preferred_element_type=jnp.float32)
    z = z + b_ref[...]                              # (B*N, Dp); padded cols stay 0

    # ---- softmax over the *batch* axis (dim=0 of (B, N, Di)) ---------------
    # Rows of z are ordered b*N + n, so each batch is a sublane-aligned row
    # slab (N is a multiple of 8).  B is a trace-time constant -> unrolled.
    zb = [z[b * N:(b + 1) * N, :] for b in range(B)]        # B x (N, Dp)
    m = zb[0]
    for t in zb[1:]:
        m = jnp.maximum(m, t)
    eb = [jnp.exp(t - m) for t in zb]
    s = eb[0]
    for t in eb[1:]:
        s = s + t
    inv = 1.0 / s                                   # exact (approx vrcp was the bug)
    for b in range(B):
        # Full 128-lane rows -> unmasked stores (lane-dense out_spec).
        ops_ref[b * N:(b + 1) * N, :] = eb[b] * inv

    # ---- adj = sigmoid(mu @ mu^T), batched over B ---------------------------
    mu3 = mu3_ref[...]                              # (B, N, Do)
    scores = jnp.einsum("bnd,bmd->bnm", mu3, mu3,
                        precision=_HIGHEST,
                        preferred_element_type=jnp.float32)  # (B, N, N)
    adj_ref[...] = jax.nn.sigmoid(scores)


def decoder_forward(mu, w, bias):
    """mu: (B, N, output_dim); w: (input_dim, output_dim); bias: (input_dim,)."""
    B, N, Do = mu.shape
    Di = w.shape[0]
    LANES = 128
    Dp = ((Di + LANES - 1) // LANES) * LANES        # fc output padded to 128 lanes

    # Wrapper-side layout plumbing (free under XLA):
    mu_flat = mu.reshape(B * N, Do)                 # collapse batch -> one 2-D matmul
    wt_pad = jnp.zeros((Do, Dp), jnp.float32).at[:, :Di].set(w.T)
    b_pad = jnp.zeros((1, Dp), jnp.float32).at[:, :Di].set(bias)

    kernel = functools.partial(_decoder_kernel, B=B, N=N)

    ops_pad, adj = pl.pallas_call(
        kernel,
        out_shape=(
            jax.ShapeDtypeStruct((B * N, Dp), jnp.float32),   # lane-dense ops slab
            jax.ShapeDtypeStruct((B, N, N), jnp.float32),
        ),
        in_specs=[
            pl.BlockSpec((B * N, Do), lambda: (0, 0)),
            pl.BlockSpec((B, N, Do), lambda: (0, 0, 0)),
            pl.BlockSpec((Do, Dp), lambda: (0, 0)),
            pl.BlockSpec((1, Dp), lambda: (0, 0)),
        ],
        out_specs=(
            pl.BlockSpec((B * N, Dp), lambda: (0, 0)),
            pl.BlockSpec((B, N, N), lambda: (0, 0, 0)),
        ),
        # Modest budget: fine on v5e/v6e, well under v7x's 64 MiB physical VMEM.
        compiler_params=pltpu.CompilerParams(vmem_limit_bytes=32 << 20),
    )(mu_flat, mu, wt_pad, b_pad)

    # Strip the lane padding and restore the (B, N, input_dim) shape outside.
    ops = ops_pad[:, :Di].reshape(B, N, Di)
    return ops, adj


def reference_forward(mu, w, bias):
    z = jnp.einsum("bnd,kd->bnk", mu, w, precision=_HIGHEST) + bias
    ops = jax.nn.softmax(z, axis=0)
    adj = jax.nn.sigmoid(jnp.einsum("bnd,bmd->bnm", mu, mu, precision=_HIGHEST))
    return ops, adj


if __name__ == "__main__":
    # Small shapes consistent with the module: Decoder(output_dim=32, input_dim=16, dropout=0.1)
    B, N = 2, 8
    output_dim, input_dim = 32, 16

    key = jax.random.PRNGKey(0)
    k_mu, k_w, k_b = jax.random.split(key, 3)

    mu = jax.random.normal(k_mu, (B, N, output_dim), dtype=jnp.float32)

    # Deterministic nn.Linear-style init: U(-1/sqrt(fan_in), 1/sqrt(fan_in))
    bound = 1.0 / (output_dim ** 0.5)
    w = jax.random.uniform(k_w, (input_dim, output_dim), jnp.float32, -bound, bound)
    bias = jax.random.uniform(k_b, (input_dim,), jnp.float32, -bound, bound)

    ops, adj = decoder_forward(mu, w, bias)
    jax.block_until_ready((ops, adj))

    ops_ref, adj_ref = reference_forward(mu, w, bias)
    assert jnp.allclose(ops, ops_ref, atol=1e-4, rtol=1e-4), "ops mismatch"
    assert jnp.allclose(adj, adj_ref, atol=1e-4, rtol=1e-4), "adj mismatch"

    print("KERNEL_OK")
</pallas_src>

<mosaic_0001>
module attributes {stable_mosaic.version = 11 : i64} {
  func.func @_decoder_kernel(%arg0: memref<16x32xf32, #tpu.memory_space<vmem>>, %arg1: memref<2x8x32xf32, #tpu.memory_space<vmem>>, %arg2: memref<32x128xf32, #tpu.memory_space<vmem>>, %arg3: memref<1x128xf32, #tpu.memory_space<vmem>>, %arg4: memref<16x128xf32, #tpu.memory_space<vmem>>, %arg5: memref<2x8x8xf32, #tpu.memory_space<vmem>>) attributes {dimension_semantics = [], scalar_prefetch = 0 : i64, scratch_operands = 0 : i64, tpu.core_type = #tpu.core_type<tc>} {
    %c0 = arith.constant 0 : index
    %c0_0 = arith.constant 0 : index
    %0 = vector.load %arg0[%c0, %c0_0] : memref<16x32xf32, #tpu.memory_space<vmem>>, vector<16x32xf32>
    %c0_1 = arith.constant 0 : index
    %c0_2 = arith.constant 0 : index
    %1 = vector.load %arg2[%c0_1, %c0_2] : memref<32x128xf32, #tpu.memory_space<vmem>>, vector<32x128xf32>
    %cst = arith.constant dense<0.000000e+00> : vector<16x128xf32>
    %2 = tpu.matmul %0, %1, %cst {dimension_numbers = #tpu.dot_dimension_numbers<[1], [0], [0], [1], [0, 0, 1, 1], [], []>, precision = #tpu.contract_precision<fp32>} : vector<16x32xf32>, vector<32x128xf32>, vector<16x128xf32> -> vector<16x128xf32>
    %c0_3 = arith.constant 0 : index
    %c0_4 = arith.constant 0 : index
    %3 = vector.load %arg3[%c0_3, %c0_4] : memref<1x128xf32, #tpu.memory_space<vmem>>, vector<1x128xf32>
    %4 = vector.broadcast %3 : vector<1x128xf32> to vector<16x128xf32>
    %5 = arith.addf %2, %4 : vector<16x128xf32>
    %6 = vector.extract_strided_slice %5 {offsets = [0, 0], sizes = [8, 128], strides = [1, 1]} : vector<16x128xf32> to vector<8x128xf32>
    %7 = vector.extract_strided_slice %5 {offsets = [8, 0], sizes = [8, 128], strides = [1, 1]} : vector<16x128xf32> to vector<8x128xf32>
    %8 = arith.maximumf %6, %7 : vector<8x128xf32>
    %9 = arith.subf %6, %8 : vector<8x128xf32>
    %10 = math.exp %9 : vector<8x128xf32>
    %11 = arith.subf %7, %8 : vector<8x128xf32>
    %12 = math.exp %11 : vector<8x128xf32>
    %13 = arith.addf %10, %12 : vector<8x128xf32>
    %cst_5 = arith.constant 1.000000e+00 : f32
    %14 = vector.broadcast %cst_5 : f32 to vector<8x128xf32>
    %15 = arith.divf %14, %13 : vector<8x128xf32>
    %16 = arith.mulf %10, %15 : vector<8x128xf32>
    %c0_6 = arith.constant 0 : index
    %c0_7 = arith.constant 0 : index
    %17 = vector.load %arg4[%c0_6, %c0_7] : memref<16x128xf32, #tpu.memory_space<vmem>>, vector<8x128xf32>
    tpu.vector_store %arg4[%c0_6, %c0_7], %16 {strides = array<i32>} : memref<16x128xf32, #tpu.memory_space<vmem>>, vector<8x128xf32>,
    %18 = arith.mulf %12, %15 : vector<8x128xf32>
    %c8 = arith.constant 8 : index
    %c0_8 = arith.constant 0 : index
    %19 = vector.load %arg4[%c8, %c0_8] : memref<16x128xf32, #tpu.memory_space<vmem>>, vector<8x128xf32>
    tpu.vector_store %arg4[%c8, %c0_8], %18 {strides = array<i32>} : memref<16x128xf32, #tpu.memory_space<vmem>>, vector<8x128xf32>,
    %c0_9 = arith.constant 0 : index
    %c0_10 = arith.constant 0 : index
    %c0_11 = arith.constant 0 : index
    %20 = vector.load %arg1[%c0_9, %c0_10, %c0_11] : memref<2x8x32xf32, #tpu.memory_space<vmem>>, vector<2x8x32xf32>
    "tpu.trace_start"() <{level = 10 : i32, message = "bnd,bmd->bnm"}> : () -> ()
    %cst_12 = arith.constant dense<0.000000e+00> : vector<2x8x8xf32>
    %21 = tpu.matmul %20, %20, %cst_12 {dimension_numbers = #tpu.dot_dimension_numbers<[2], [2], [1], [1], [0, 0, 0, 1, 1, 1], [0], [0]>, precision = #tpu.contract_precision<fp32>} : vector<2x8x32xf32>, vector<2x8x32xf32>, vector<2x8x8xf32> -> vector<2x8x8xf32>
    "tpu.trace_stop"() : () -> ()
    %22 = arith.negf %21 : vector<2x8x8xf32>
    %23 = math.exp %22 : vector<2x8x8xf32>
    %cst_13 = arith.constant 1.000000e+00 : f32
    %24 = vector.broadcast %cst_13 : f32 to vector<2x8x8xf32>
    %25 = arith.addf %24, %23 : vector<2x8x8xf32>
    %26 = arith.divf %24, %25 : vector<2x8x8xf32>
    %c0_14 = arith.constant 0 : index
    %c0_15 = arith.constant 0 : index
    %c0_16 = arith.constant 0 : index
    %27 = vector.load %arg5[%c0_14, %c0_15, %c0_16] : memref<2x8x8xf32, #tpu.memory_space<vmem>>, vector<2x8x8xf32>
    tpu.vector_store %arg5[%c0_14, %c0_15, %c0_16], %26 {strides = array<i32>} : memref<2x8x8xf32, #tpu.memory_space<vmem>>, vector<2x8x8xf32>,
    return
  }
}

</mosaic_0001>

<llo_original>
// kernel: tpu_custom_call.1
$region0: #{tpu_custom_call.1}
  #allocation0 [shape = 'u32[]', space=smem, size = 0x4, offset = 0x4, fixed_abs, tag = 'smem constant byte address 0x4 - core index']
  #allocation1 [shape = 'u32[144,128]{1,0:T(1,128)}', space=vmem, size = 0x12000, scoped, tag = 'internal scratch']
  %s0 = inlined_call_operand.hbm [shape: f32[16,32], index: 0, kind: input, shape index: {}]
  %s1 = inlined_call_operand.hbm [shape: f32[2,8,32], index: 1, kind: input, shape index: {}]
  %s2 = inlined_call_operand.hbm [shape: f32[32,128], index: 2, kind: input, shape index: {}]
  %s3 = inlined_call_operand.vmem [shape: f32[1,128], index: 3, kind: input, shape index: {}]
  %s4 = inlined_call_operand.hbm [shape: f32[16,128], index: 4, kind: output, shape index: {0}]
  %s5 = inlined_call_operand.hbm [shape: f32[2,8,8], index: 5, kind: output, shape index: {1}]
  %6 = xla_tuple %s4, %s5
  %s7 = sld [smem:[#allocation0]]
  $region46: #{tpu_custom_call.1} parent=0
    _
  %s9 = ssub.s32 1, %s7
  %s10 = scalar_select 0, %s9, %s7
  $region1: #{tpu_custom_call.1} parent=0
    #allocation2 [shape = 'u8[8192]{0}', space=vmem, size = 0x2000, scoped, tag = 'input window, operand 0, single buffered']
    #allocation3 [shape = 's32[1]{0}', space=sflag, size = 0x4, scoped, tag = 'scoped memory for tpu_custom_call.1']
    #allocation4 [shape = 's32[1]{0}', space=sflag, size = 0x4, scoped, tag = 'scoped memory for tpu_custom_call.1']
    #allocation5 [shape = 'u8[8192]{0}', space=vmem, size = 0x2000, scoped, tag = 'input window, operand 1, single buffered']
    #allocation6 [shape = 's32[1]{0}', space=sflag, size = 0x4, scoped, tag = 'scoped memory for tpu_custom_call.1']
    #allocation7 [shape = 'u8[16384]{0}', space=vmem, size = 0x4000, scoped, tag = 'input window, operand 2, single buffered']
    #allocation8 [shape = 'u8[8192]{0}', space=vmem, size = 0x2000, scoped, tag = 'output window, operand 0, single buffered']
    #allocation9 [shape = 'u8[8192]{0}', space=vmem, size = 0x2000, scoped, tag = 'output window, operand 1, single buffered']
    #allocation10 [shape = 's32[1]{0}', space=sflag, size = 0x4, scoped, tag = 'scoped memory for tpu_custom_call.1']
    %11 = vsyncpa [#allocation3], 0
    %12 = vsyncpa [#allocation6], 0
    %13 = vsyncpa [#allocation4], 0
    %14 = vsyncpa [#allocation10], 0
    // Predicated region
    $region2: #{tpu_custom_call.1} parent=1 // pred_check
      _
    $region3: #{tpu_custom_call.1} parent=1 // pred_check_branch
      %16 = sbr.rel (0) target = $region5
    $region4: #{tpu_custom_call.1} parent=1 // pred_region
      %s18 = ssub.s32 256, 256
      %19 = vsyncadd [#allocation3], %s18
      %s20 = sshll.u32 [#allocation2], 4
      %s21 = int_to_ptr.vmem [resolvable:$true] %s20
      %26 = dma.hbm_to_vmem [thread:$0]  %s0, 256, %s21, [#allocation3], 128, 128, 8
    $region5: #{tpu_custom_call.1} parent=1 // pred_fallthru
      _
    // Predicated region
    $region6: #{tpu_custom_call.1} parent=1 // pred_check
      _
    $region7: #{tpu_custom_call.1} parent=1 // pred_check_branch
      %28 = sbr.rel (0) target = $region9
    $region8: #{tpu_custom_call.1} parent=1 // pred_region
      %s30 = ssub.s32 256, 256
      %31 = vsyncadd [#allocation6], %s30
      %s32 = sshll.u32 [#allocation5], 4
      %s33 = int_to_ptr.vmem [resolvable:$true] %s32
      %38 = dma.hbm_to_vmem [thread:$0]  %s1, 256, %s33, [#allocation6], 128, 128, 8
    $region9: #{tpu_custom_call.1} parent=1 // pred_fallthru
      _
    // Predicated region
    $region10: #{tpu_custom_call.1} parent=1 // pred_check
      _
    $region11: #{tpu_custom_call.1} parent=1 // pred_check_branch
      %40 = sbr.rel (0) target = $region13
    $region12: #{tpu_custom_call.1} parent=1 // pred_region
      %s42 = ssub.s32 512, 512
      %43 = vsyncadd [#allocation6], %s42
      %s44 = sshll.u32 [#allocation7], 4
      %s45 = int_to_ptr.vmem [resolvable:$true] %s44
      %50 = dma.hbm_to_vmem [thread:$0]  %s2, 512, %s45, [#allocation6], 128, 128, 8
    $region13: #{tpu_custom_call.1} parent=1 // pred_fallthru
      _
    // Predicated region
    $region14: #{tpu_custom_call.1} parent=1 // pred_check
      _
    $region15: #{tpu_custom_call.1} parent=1 // pred_check_branch
      %52 = sbr.rel (0) target = $region17
    $region16: #{tpu_custom_call.1} parent=1 // pred_region
      _
    $region17: #{tpu_custom_call.1} parent=1 // pred_fallthru
      _
    // Predicated region
    $region18: #{tpu_custom_call.1} parent=1 // pred_check
      _
    $region19: #{tpu_custom_call.1} parent=1 // pred_check_branch
      %54 = sbr.rel (0) target = $region21
    $region20: #{tpu_custom_call.1} parent=1 // pred_region
      %55 = dma.done [#allocation3], 256
    $region21: #{tpu_custom_call.1} parent=1 // pred_fallthru
      _
    // Predicated region
    $region22: #{tpu_custom_call.1} parent=1 // pred_check
      _
    $region23: #{tpu_custom_call.1} parent=1 // pred_check_branch
      %57 = sbr.rel (0) target = $region25
    $region24: #{tpu_custom_call.1} parent=1 // pred_region
      %58 = dma.done [#allocation6], 256
    $region25: #{tpu_custom_call.1} parent=1 // pred_fallthru
      _
    // Predicated region
    $region26: #{tpu_custom_call.1} parent=1 // pred_check
      _
    $region27: #{tpu_custom_call.1} parent=1 // pred_check_branch
      %60 = sbr.rel (0) target = $region29
    $region28: #{tpu_custom_call.1} parent=1 // pred_region
      %61 = dma.done [#allocation6], 512
    $region29: #{tpu_custom_call.1} parent=1 // pred_fallthru
      _
    %v62 = vld [vmem:[#allocation2] sm:$0xff]
    %v63 = vld [vmem:[#allocation2 + $0x8] sm:$0xff]
    %v64 = vld [vmem:[#allocation7] sm:$0xff]
    %v65 = vld [vmem:[#allocation7 + $0x8] sm:$0xff]
    %v66 = vld [vmem:[#allocation7 + $0x10] sm:$0xff]
    %v67 = vld [vmem:[#allocation7 + $0x18] sm:$0xff]
    %v68 = vld [vmem:[%s3] sm:$0x1]
    %v70 = vlaneseq
    %v71 = vshrl.u32 %v70, 7
    %v72 = vsub.s32 0, %v71
    %v73 = vrot.slane %v68, %v72
    %vm75 = vcmask 261120
    %v77 = vsel %vm75, %v62, 0
    %v80 = vsel %vm75, %v63, 0
    %82 = vmatprep.subr.mxu0 0.0
    %v83 = vand.u32 %v64, 4294901760
    %84 = vmatpush1.msra.mxu0 %v83
    %85 = vmatprep.subr.mxu0 0.0
    %v86 = vand.u32 %v65, 4294901760
    %87 = vmatpush1.msra.mxu0 %v86
    %88 = vmatprep.subr.mxu0 0.0
    %v89 = vand.u32 %v66, 4294901760
    %90 = vmatpush1.msra.mxu0 %v89
    %91 = vmatprep.subr.mxu0 0.0
    %v92 = vand.u32 %v67, 4294901760
    %93 = vmatpush1.msra.mxu0 %v92
    %94 = vmatprep.subr.mxu0 0.0
    %95 = vmatpush1.msra.mxu0 0.0
    %96 = vmatprep.subr.mxu0 0.0
    %97 = vmatpush1.msra.mxu0 0.0
    %98 = vmatprep.subr.mxu0 0.0
    %99 = vmatpush1.msra.mxu0 0.0
    %100 = vmatprep.subr.mxu0 0.0
    %101 = vmatpush1.msra.mxu0 0.0
    %102 = vmatprep.subr.mxu0 0.0
    %103 = vmatpush1.msra.mxu0 0.0
    %104 = vmatprep.subr.mxu0 0.0
    %105 = vmatpush1.msra.mxu0 0.0
    %106 = vmatprep.subr.mxu0 0.0
    %107 = vmatpush1.msra.mxu0 0.0
    %108 = vmatprep.subr.mxu0 0.0
    %109 = vmatpush1.msra.mxu0 0.0
    %110 = vmatprep.subr.mxu0 0.0
    %111 = vmatpush1.msra.mxu0 0.0
    %112 = vmatprep.subr.mxu0 0.0
    %113 = vmatpush1.msra.mxu0 0.0
    %114 = vmatprep.subr.mxu0 0.0
    %115 = vmatpush1.msra.mxu0 0.0
    %116 = vmatprep.subr.mxu0 0.0
    %117 = vmatpush1.msra.mxu0 0.0
    %118 = vmatprep.subr.mxu0 0.0
    %119 = vmatpush1.msra.mxu0 0.0
    %120 = vmatprep.subr.mxu0 0.0
    %121 = vmatpush1.msra.mxu0 0.0
    %122 = vmatprep.subr.mxu0 0.0
    %123 = vmatpush1.msra.mxu0 0.0
    %124 = vmatprep.subr.mxu0 0.0
    %125 = vmatpush1.msra.mxu0 0.0
    %126 = vmatprep.subr.mxu0 0.0
    %127 = vmatpush1.msra.mxu0 0.0
    %128 = vmatprep.subr.mxu0 0.0
    %129 = vmatpush1.msra.mxu0 0.0
    %130 = vmatprep.subr.mxu0 0.0
    %131 = vmatpush1.msra.mxu0 0.0
    %132 = vmatprep.subr.mxu0 0.0
    %133 = vmatpush1.msra.mxu0 0.0
    %134 = vmatprep.subr.mxu0 0.0
    %135 = vmatpush1.msra.mxu0 0.0
    %136 = vmatprep.subr.mxu0 0.0
    %137 = vmatpush1.msra.mxu0 0.0
    %138 = vmatprep.subr.mxu0 0.0
    %139 = vmatpush1.msra.mxu0 0.0
    %140 = vmatprep.subr.mxu0 0.0
    %141 = vmatpush1.msra.mxu0 0.0
    %142 = vmatprep.subr.mxu0 0.0
    %143 = vmatpush1.msra.mxu0 0.0
    %144 = vmatprep.subr.mxu0 0.0
    %145 = vmatpush1.msra.mxu0 0.0
    %146 = vmatprep.subr.mxu0 0.0
    %147 = vmatpush1.msra.mxu0 0.0
    %148 = vmatprep.subr.mxu0 0.0
    %149 = vmatpush1.msra.mxu0 0.0
    %150 = vmatprep.mubr.f32.mxu0 0.0
    %v151 = vand.u32 %v77, 4294901760
    %v152 = vsub.f32 %v77, %v151
    %v153 = vand.u32 %v152, 4294901760
    %v154 = vsub.f32 %v152, %v153
    %v155 = vand.u32 %v154, 4294901760
    %156 = vmatmul.mubr.f32.gmra.mrb[0].mxu0 %v155
    %v157 = vpop.f32.mrb[0].mxu0
    %v158 = vadd.f32 %v73, %v157
    %v159 = vpop.f32.mrb[0].mxu0
    %160 = vmatprep.mubr.f32.mxu0 0.0
    %v161 = vand.u32 %v80, 4294901760
    %v162 = vsub.f32 %v80, %v161
    %v163 = vand.u32 %v162, 4294901760
    %v164 = vsub.f32 %v162, %v163
    %v165 = vand.u32 %v164, 4294901760
    %166 = vmatmul.mubr.f32.gmra.mrb[0].mxu0 %v165
    %v167 = vpop.f32.mrb[0].mxu0
    %v168 = vadd.f32 %v73, %v167
    %v169 = vpop.f32.mrb[0].mxu0
    %170 = vdwg.mxu0
    %171 = vmatprep.subr.mxu0 0.0
    %v172 = vand.u32 %v64, 4294901760
    %v173 = vsub.f32 %v64, %v172
    %v174 = vand.u32 %v173, 4294901760
    %v175 = vsub.f32 %v173, %v174
    %v176 = vand.u32 %v175, 4294901760
    %177 = vmatpush1.msra.mxu0 %v176
    %178 = vmatprep.subr.mxu0 0.0
    %v179 = vand.u32 %v65, 4294901760
    %v180 = vsub.f32 %v65, %v179
    %v181 = vand.u32 %v180, 4294901760
    %v182 = vsub.f32 %v180, %v181
    %v183 = vand.u32 %v182, 4294901760
    %184 = vmatpush1.msra.mxu0 %v183
    %185 = vmatprep.subr.mxu0 0.0
    %v186 = vand.u32 %v66, 4294901760
    %v187 = vsub.f32 %v66, %v186
    %v188 = vand.u32 %v187, 4294901760
    %v189 = vsub.f32 %v187, %v188
    %v190 = vand.u32 %v189, 4294901760
    %191 = vmatpush1.msra.mxu0 %v190
    %192 = vmatprep.subr.mxu0 0.0
    %v193 = vand.u32 %v67, 4294901760
    %v194 = vsub.f32 %v67, %v193
    %v195 = vand.u32 %v194, 4294901760
    %v196 = vsub.f32 %v194, %v195
    %v197 = vand.u32 %v196, 4294901760
    %198 = vmatpush1.msra.mxu0 %v197
    %199 = vmatprep.subr.mxu0 0.0
    %200 = vmatpush1.msra.mxu0 0.0
    %201 = vmatprep.subr.mxu0 0.0
    %202 = vmatpush1.msra.mxu0 0.0
    %203 = vmatprep.subr.mxu0 0.0
    %204 = vmatpush1.msra.mxu0 0.0
    %205 = vmatprep.subr.mxu0 0.0
    %206 = vmatpush1.msra.mxu0 0.0
    %207 = vmatprep.subr.mxu0 0.0
    %208 = vmatpush1.msra.mxu0 0.0
    %209 = vmatprep.subr.mxu0 0.0
    %210 = vmatpush1.msra.mxu0 0.0
    %211 = vmatprep.subr.mxu0 0.0
    %212 = vmatpush1.msra.mxu0 0.0
    %213 = vmatprep.subr.mxu0 0.0
    %214 = vmatpush1.msra.mxu0 0.0
    %215 = vmatprep.subr.mxu0 0.0
    %216 = vmatpush1.msra.mxu0 0.0
    %217 = vmatprep.subr.mxu0 0.0
    %218 = vmatpush1.msra.mxu0 0.0
    %219 = vmatprep.subr.mxu0 0.0
    %220 = vmatpush1.msra.mxu0 0.0
    %221 = vmatprep.subr.mxu0 0.0
    %222 = vmatpush1.msra.mxu0 0.0
    %223 = vmatprep.subr.mxu0 0.0
    %224 = vmatpush1.msra.mxu0 0.0
    %225 = vmatprep.subr.mxu0 0.0
    %226 = vmatpush1.msra.mxu0 0.0
    %227 = vmatprep.subr.mxu0 0.0
    %228 = vmatpush1.msra.mxu0 0.0
    %229 = vmatprep.subr.mxu0 0.0
    %230 = vmatpush1.msra.mxu0 0.0
    %231 = vmatprep.subr.mxu0 0.0
    %232 = vmatpush1.msra.mxu0 0.0
    %233 = vmatprep.subr.mxu0 0.0
    %234 = vmatpush1.msra.mxu0 0.0
    %235 = vmatprep.subr.mxu0 0.0
    %236 = vmatpush1.msra.mxu0 0.0
    %237 = vmatprep.subr.mxu0 0.0
    %238 = vmatpush1.msra.mxu0 0.0
    %239 = vmatprep.subr.mxu0 0.0
    %240 = vmatpush1.msra.mxu0 0.0
    %241 = vmatprep.subr.mxu0 0.0
    %242 = vmatpush1.msra.mxu0 0.0
    %243 = vmatprep.subr.mxu0 0.0
    %244 = vmatpush1.msra.mxu0 0.0
    %245 = vmatprep.subr.mxu0 0.0
    %246 = vmatpush1.msra.mxu0 0.0
    %247 = vmatprep.subr.mxu0 0.0
    %248 = vmatpush1.msra.mxu0 0.0
    %249 = vmatprep.subr.mxu0 0.0
    %250 = vmatpush1.msra.mxu0 0.0
    %251 = vmatprep.subr.mxu0 0.0
    %252 = vmatpush1.msra.mxu0 0.0
    %253 = vmatprep.subr.mxu0 0.0
    %254 = vmatpush1.msra.mxu0 0.0
    %255 = vmatprep.mubr.f32.mxu0 0.0
    %v256 = vand.u32 %v77, 4294901760
    %257 = vmatmul.mubr.f32.gmra.mrb[0].mxu0 %v256
    %v258 = vpop.f32.mrb[0].mxu0
    %v259 = vadd.f32 %v158, %v258
    %v260 = vpop.f32.mrb[0].mxu0
    %261 = vmatprep.mubr.f32.mxu0 0.0
    %v262 = vand.u32 %v80, 4294901760
    %263 = vmatmul.mubr.f32.gmra.mrb[0].mxu0 %v262
    %v264 = vpop.f32.mrb[0].mxu0
    %v265 = vadd.f32 %v168, %v264
    %v266 = vpop.f32.mrb[0].mxu0
    %267 = vdwg.mxu0
    %268 = vmatprep.subr.mxu0 0.0
    %v269 = vand.u32 %v64, 4294901760
    %v270 = vsub.f32 %v64, %v269
    %271 = vmatpush1.msra.mxu0 %v270
    %272 = vmatprep.subr.mxu0 0.0
    %v273 = vand.u32 %v65, 4294901760
    %v274 = vsub.f32 %v65, %v273
    %275 = vmatpush1.msra.mxu0 %v274
    %276 = vmatprep.subr.mxu0 0.0
    %v277 = vand.u32 %v66, 4294901760
    %v278 = vsub.f32 %v66, %v277
    %279 = vmatpush1.msra.mxu0 %v278
    %280 = vmatprep.subr.mxu0 0.0
    %v281 = vand.u32 %v67, 4294901760
    %v282 = vsub.f32 %v67, %v281
    %283 = vmatpush1.msra.mxu0 %v282
    %284 = vmatprep.subr.mxu0 0.0
    %285 = vmatpush1.msra.mxu0 0.0
    %286 = vmatprep.subr.mxu0 0.0
    %287 = vmatpush1.msra.mxu0 0.0
    %288 = vmatprep.subr.mxu0 0.0
    %289 = vmatpush1.msra.mxu0 0.0
    %290 = vmatprep.subr.mxu0 0.0
    %291 = vmatpush1.msra.mxu0 0.0
    %292 = vmatprep.subr.mxu0 0.0
    %293 = vmatpush1.msra.mxu0 0.0
    %294 = vmatprep.subr.mxu0 0.0
    %295 = vmatpush1.msra.mxu0 0.0
    %296 = vmatprep.subr.mxu0 0.0
    %297 = vmatpush1.msra.mxu0 0.0
    %298 = vmatprep.subr.mxu0 0.0
    %299 = vmatpush1.msra.mxu0 0.0
    %300 = vmatprep.subr.mxu0 0.0
    %301 = vmatpush1.msra.mxu0 0.0
    %302 = vmatprep.subr.mxu0 0.0
    %303 = vmatpush1.msra.mxu0 0.0
    %304 = vmatprep.subr.mxu0 0.0
    %305 = vmatpush1.msra.mxu0 0.0
    %306 = vmatprep.subr.mxu0 0.0
    %307 = vmatpush1.msra.mxu0 0.0
    %308 = vmatprep.subr.mxu0 0.0
    %309 = vmatpush1.msra.mxu0 0.0
    %310 = vmatprep.subr.mxu0 0.0
    %311 = vmatpush1.msra.mxu0 0.0
    %312 = vmatprep.subr.mxu0 0.0
    %313 = vmatpush1.msra.mxu0 0.0
    %314 = vmatprep.subr.mxu0 0.0
    %315 = vmatpush1.msra.mxu0 0.0
    %316 = vmatprep.subr.mxu0 0.0
    %317 = vmatpush1.msra.mxu0 0.0
    %318 = vmatprep.subr.mxu0 0.0
    %319 = vmatpush1.msra.mxu0 0.0
    %320 = vmatprep.subr.mxu0 0.0
    %321 = vmatpush1.msra.mxu0 0.0
    %322 = vmatprep.subr.mxu0 0.0
    %323 = vmatpush1.msra.mxu0 0.0
    %324 = vmatprep.subr.mxu0 0.0
    %325 = vmatpush1.msra.mxu0 0.0
    %326 = vmatprep.subr.mxu0 0.0
    %327 = vmatpush1.msra.mxu0 0.0
    %328 = vmatprep.subr.mxu0 0.0
    %329 = vmatpush1.msra.mxu0 0.0
    %330 = vmatprep.subr.mxu0 0.0
    %331 = vmatpush1.msra.mxu0 0.0
    %332 = vmatprep.subr.mxu0 0.0
    %333 = vmatpush1.msra.mxu0 0.0
    %334 = vmatprep.subr.mxu0 0.0
    %335 = vmatpush1.msra.mxu0 0.0
    %336 = vmatprep.subr.mxu0 0.0
    %337 = vmatpush1.msra.mxu0 0.0
    %338 = vmatprep.subr.mxu0 0.0
    %339 = vmatpush1.msra.mxu0 0.0
    %340 = vmatprep.mubr.f32.mxu0 0.0
    %v341 = vand.u32 %v77, 4294901760
    %v342 = vsub.f32 %v77, %v341
    %343 = vmatmul.mubr.f32.gmra.mrb[0].mxu0 %v342
    %v344 = vpop.f32.mrb[0].mxu0
    %v345 = vadd.f32 %v259, %v344
    %v346 = vpop.f32.mrb[0].mxu0
    %347 = vmatprep.mubr.f32.mxu0 0.0
    %v348 = vand.u32 %v80, 4294901760
    %v349 = vsub.f32 %v80, %v348
    %350 = vmatmul.mubr.f32.gmra.mrb[0].mxu0 %v349
    %v351 = vpop.f32.mrb[0].mxu0
    %v352 = vadd.f32 %v265, %v351
    %v353 = vpop.f32.mrb[0].mxu0
    %354 = vdwg.mxu0
    %355 = vmatprep.subr.mxu0 0.0
    %v356 = vand.u32 %v64, 4294901760
    %357 = vmatpush1.msra.mxu0 %v356
    %358 = vmatprep.subr.mxu0 0.0
    %v359 = vand.u32 %v65, 4294901760
    %360 = vmatpush1.msra.mxu0 %v359
    %361 = vmatprep.subr.mxu0 0.0
    %v362 = vand.u32 %v66, 4294901760
    %363 = vmatpush1.msra.mxu0 %v362
    %364 = vmatprep.subr.mxu0 0.0
    %v365 = vand.u32 %v67, 4294901760
    %366 = vmatpush1.msra.mxu0 %v365
    %367 = vmatprep.subr.mxu0 0.0
    %368 = vmatpush1.msra.mxu0 0.0
    %369 = vmatprep.subr.mxu0 0.0
    %370 = vmatpush1.msra.mxu0 0.0
    %371 = vmatprep.subr.mxu0 0.0
    %372 = vmatpush1.msra.mxu0 0.0
    %373 = vmatprep.subr.mxu0 0.0
    %374 = vmatpush1.msra.mxu0 0.0
    %375 = vmatprep.subr.mxu0 0.0
    %376 = vmatpush1.msra.mxu0 0.0
    %377 = vmatprep.subr.mxu0 0.0
    %378 = vmatpush1.msra.mxu0 0.0
    %379 = vmatprep.subr.mxu0 0.0
    %380 = vmatpush1.msra.mxu0 0.0
    %381 = vmatprep.subr.mxu0 0.0
    %382 = vmatpush1.msra.mxu0 0.0
    %383 = vmatprep.subr.mxu0 0.0
    %384 = vmatpush1.msra.mxu0 0.0
    %385 = vmatprep.subr.mxu0 0.0
    %386 = vmatpush1.msra.mxu0 0.0
    %387 = vmatprep.subr.mxu0 0.0
    %388 = vmatpush1.msra.mxu0 0.0
    %389 = vmatprep.subr.mxu0 0.0
    %390 = vmatpush1.msra.mxu0 0.0
    %391 = vmatprep.subr.mxu0 0.0
    %392 = vmatpush1.msra.mxu0 0.0
    %393 = vmatprep.subr.mxu0 0.0
    %394 = vmatpush1.msra.mxu0 0.0
    %395 = vmatprep.subr.mxu0 0.0
    %396 = vmatpush1.msra.mxu0 0.0
    %397 = vmatprep.subr.mxu0 0.0
    %398 = vmatpush1.msra.mxu0 0.0
    %399 = vmatprep.subr.mxu0 0.0
    %400 = vmatpush1.msra.mxu0 0.0
    %401 = vmatprep.subr.mxu0 0.0
    %402 = vmatpush1.msra.mxu0 0.0
    %403 = vmatprep.subr.mxu0 0.0
    %404 = vmatpush1.msra.mxu0 0.0
    %405 = vmatprep.subr.mxu0 0.0
    %406 = vmatpush1.msra.mxu0 0.0
    %407 = vmatprep.subr.mxu0 0.0
    %408 = vmatpush1.msra.mxu0 0.0
    %409 = vmatprep.subr.mxu0 0.0
    %410 = vmatpush1.msra.mxu0 0.0
    %411 = vmatprep.subr.mxu0 0.0
    %412 = vmatpush1.msra.mxu0 0.0
    %413 = vmatprep.subr.mxu0 0.0
    %414 = vmatpush1.msra.mxu0 0.0
    %415 = vmatprep.subr.mxu0 0.0
    %416 = vmatpush1.msra.mxu0 0.0
    %417 = vmatprep.subr.mxu0 0.0
    %418 = vmatpush1.msra.mxu0 0.0
    %419 = vmatprep.subr.mxu0 0.0
    %420 = vmatpush1.msra.mxu0 0.0
    %421 = vmatprep.subr.mxu0 0.0
    %422 = vmatpush1.msra.mxu0 0.0
    %423 = vmatprep.mubr.f32.mxu0 0.0
    %v424 = vand.u32 %v77, 4294901760
    %v425 = vsub.f32 %v77, %v424
    %v426 = vand.u32 %v425, 4294901760
    %427 = vmatmul.mubr.f32.gmra.mrb[0].mxu0 %v426
    %v428 = vpop.f32.mrb[0].mxu0
    %v429 = vadd.f32 %v345, %v428
    %v430 = vpop.f32.mrb[0].mxu0
    %431 = vmatprep.mubr.f32.mxu0 0.0
    %v432 = vand.u32 %v80, 4294901760
    %v433 = vsub.f32 %v80, %v432
    %v434 = vand.u32 %v433, 4294901760
    %435 = vmatmul.mubr.f32.gmra.mrb[0].mxu0 %v434
    %v436 = vpop.f32.mrb[0].mxu0
    %v437 = vadd.f32 %v352, %v436
    %v438 = vpop.f32.mrb[0].mxu0
    %439 = vdwg.mxu0
    %440 = vmatprep.subr.mxu0 0.0
    %v441 = vand.u32 %v64, 4294901760
    %v442 = vsub.f32 %v64, %v441
    %v443 = vand.u32 %v442, 4294901760
    %444 = vmatpush1.msra.mxu0 %v443
    %445 = vmatprep.subr.mxu0 0.0
    %v446 = vand.u32 %v65, 4294901760
    %v447 = vsub.f32 %v65, %v446
    %v448 = vand.u32 %v447, 4294901760
    %449 = vmatpush1.msra.mxu0 %v448
    %450 = vmatprep.subr.mxu0 0.0
    %v451 = vand.u32 %v66, 4294901760
    %v452 = vsub.f32 %v66, %v451
    %v453 = vand.u32 %v452, 4294901760
    %454 = vmatpush1.msra.mxu0 %v453
    %455 = vmatprep.subr.mxu0 0.0
    %v456 = vand.u32 %v67, 4294901760
    %v457 = vsub.f32 %v67, %v456
    %v458 = vand.u32 %v457, 4294901760
    %459 = vmatpush1.msra.mxu0 %v458
    %460 = vmatprep.subr.mxu0 0.0
    %461 = vmatpush1.msra.mxu0 0.0
    %462 = vmatprep.subr.mxu0 0.0
    %463 = vmatpush1.msra.mxu0 0.0
    %464 = vmatprep.subr.mxu0 0.0
    %465 = vmatpush1.msra.mxu0 0.0
    %466 = vmatprep.subr.mxu0 0.0
    %467 = vmatpush1.msra.mxu0 0.0
    %468 = vmatprep.subr.mxu0 0.0
    %469 = vmatpush1.msra.mxu0 0.0
    %470 = vmatprep.subr.mxu0 0.0
    %471 = vmatpush1.msra.mxu0 0.0
    %472 = vmatprep.subr.mxu0 0.0
    %473 = vmatpush1.msra.mxu0 0.0
    %474 = vmatprep.subr.mxu0 0.0
    %475 = vmatpush1.msra.mxu0 0.0
    %476 = vmatprep.subr.mxu0 0.0
    %477 = vmatpush1.msra.mxu0 0.0
    %478 = vmatprep.subr.mxu0 0.0
    %479 = vmatpush1.msra.mxu0 0.0
    %480 = vmatprep.subr.mxu0 0.0
    %481 = vmatpush1.msra.mxu0 0.0
    %482 = vmatprep.subr.mxu0 0.0
    %483 = vmatpush1.msra.mxu0 0.0
    %484 = vmatprep.subr.mxu0 0.0
    %485 = vmatpush1.msra.mxu0 0.0
    %486 = vmatprep.subr.mxu0 0.0
    %487 = vmatpush1.msra.mxu0 0.0
    %488 = vmatprep.subr.mxu0 0.0
    %489 = vmatpush1.msra.mxu0 0.0
    %490 = vmatprep.subr.mxu0 0.0
    %491 = vmatpush1.msra.mxu0 0.0
    %492 = vmatprep.subr.mxu0 0.0
    %493 = vmatpush1.msra.mxu0 0.0
    %494 = vmatprep.subr.mxu0 0.0
    %495 = vmatpush1.msra.mxu0 0.0
    %496 = vmatprep.subr.mxu0 0.0
    %497 = vmatpush1.msra.mxu0 0.0
    %498 = vmatprep.subr.mxu0 0.0
    %499 = vmatpush1.msra.mxu0 0.0
    %500 = vmatprep.subr.mxu0 0.0
    %501 = vmatpush1.msra.mxu0 0.0
    %502 = vmatprep.subr.mxu0 0.0
    %503 = vmatpush1.msra.mxu0 0.0
    %504 = vmatprep.subr.mxu0 0.0
    %505 = vmatpush1.msra.mxu0 0.0
    %506 = vmatprep.subr.mxu0 0.0
    %507 = vmatpush1.msra.mxu0 0.0
    %508 = vmatprep.subr.mxu0 0.0
    %509 = vmatpush1.msra.mxu0 0.0
    %510 = vmatprep.subr.mxu0 0.0
    %511 = vmatpush1.msra.mxu0 0.0
    %512 = vmatprep.subr.mxu0 0.0
    %513 = vmatpush1.msra.mxu0 0.0
    %514 = vmatprep.subr.mxu0 0.0
    %515 = vmatpush1.msra.mxu0 0.0
    %516 = vmatprep.mubr.f32.mxu0 0.0
    %v517 = vand.u32 %v77, 4294901760
    %518 = vmatmul.mubr.f32.gmra.mrb[0].mxu0 %v517
    %v519 = vpop.f32.mrb[0].mxu0
    %v520 = vadd.f32 %v429, %v519
    %v521 = vpop.f32.mrb[0].mxu0
    %522 = vmatprep.mubr.f32.mxu0 0.0
    %v523 = vand.u32 %v80, 4294901760
    %524 = vmatmul.mubr.f32.gmra.mrb[0].mxu0 %v523
    %v525 = vpop.f32.mrb[0].mxu0
    %v526 = vadd.f32 %v437, %v525
    %v527 = vpop.f32.mrb[0].mxu0
    %528 = vdwg.mxu0
    %529 = vmatprep.subr.mxu0 0.0
    %v530 = vand.u32 %v64, 4294901760
    %531 = vmatpush1.msra.mxu0 %v530
    %532 = vmatprep.subr.mxu0 0.0
    %v533 = vand.u32 %v65, 4294901760
    %534 = vmatpush1.msra.mxu0 %v533
    %535 = vmatprep.subr.mxu0 0.0
    %v536 = vand.u32 %v66, 4294901760
    %537 = vmatpush1.msra.mxu0 %v536
    %538 = vmatprep.subr.mxu0 0.0
    %v539 = vand.u32 %v67, 4294901760
    %540 = vmatpush1.msra.mxu0 %v539
    %541 = vmatprep.subr.mxu0 0.0
    %542 = vmatpush1.msra.mxu0 0.0
    %543 = vmatprep.subr.mxu0 0.0
    %544 = vmatpush1.msra.mxu0 0.0
    %545 = vmatprep.subr.mxu0 0.0
    %546 = vmatpush1.msra.mxu0 0.0
    %547 = vmatprep.subr.mxu0 0.0
    %548 = vmatpush1.msra.mxu0 0.0
    %549 = vmatprep.subr.mxu0 0.0
    %550 = vmatpush1.msra.mxu0 0.0
    %551 = vmatprep.subr.mxu0 0.0
    %552 = vmatpush1.msra.mxu0 0.0
    %553 = vmatprep.subr.mxu0 0.0
    %554 = vmatpush1.msra.mxu0 0.0
    %555 = vmatprep.subr.mxu0 0.0
    %556 = vmatpush1.msra.mxu0 0.0
    %557 = vmatprep.subr.mxu0 0.0
    %558 = vmatpush1.msra.mxu0 0.0
    %559 = vmatprep.subr.mxu0 0.0
    %560 = vmatpush1.msra.mxu0 0.0
    %561 = vmatprep.subr.mxu0 0.0
    %562 = vmatpush1.msra.mxu0 0.0
    %563 = vmatprep.subr.mxu0 0.0
    %564 = vmatpush1.msra.mxu0 0.0
    %565 = vmatprep.subr.mxu0 0.0
    %566 = vmatpush1.msra.mxu0 0.0
    %567 = vmatprep.subr.mxu0 0.0
    %568 = vmatpush1.msra.mxu0 0.0
    %569 = vmatprep.subr.mxu0 0.0
    %570 = vmatpush1.msra.mxu0 0.0
    %571 = vmatprep.subr.mxu0 0.0
    %572 = vmatpush1.msra.mxu0 0.0
    %573 = vmatprep.subr.mxu0 0.0
    %574 = vmatpush1.msra.mxu0 0.0
    %575 = vmatprep.subr.mxu0 0.0
    %576 = vmatpush1.msra.mxu0 0.0
    %577 = vmatprep.subr.mxu0 0.0
    %578 = vmatpush1.msra.mxu0 0.0
    %579 = vmatprep.subr.mxu0 0.0
    %580 = vmatpush1.msra.mxu0 0.0
    %581 = vmatprep.subr.mxu0 0.0
    %582 = vmatpush1.msra.mxu0 0.0
    %583 = vmatprep.subr.mxu0 0.0
    %584 = vmatpush1.msra.mxu0 0.0
    %585 = vmatprep.subr.mxu0 0.0
    %586 = vmatpush1.msra.mxu0 0.0
    %587 = vmatprep.subr.mxu0 0.0
    %588 = vmatpush1.msra.mxu0 0.0
    %589 = vmatprep.subr.mxu0 0.0
    %590 = vmatpush1.msra.mxu0 0.0
    %591 = vmatprep.subr.mxu0 0.0
    %592 = vmatpush1.msra.mxu0 0.0
    %593 = vmatprep.subr.mxu0 0.0
    %594 = vmatpush1.msra.mxu0 0.0
    %595 = vmatprep.subr.mxu0 0.0
    %596 = vmatpush1.msra.mxu0 0.0
    %597 = vmatprep.mubr.f32.mxu0 0.0
    %v598 = vand.u32 %v77, 4294901760
    %599 = vmatmul.mubr.f32.gmra.mrb[0].mxu0 %v598
    %v600 = vpop.f32.mrb[0].mxu0
    %v601 = vadd.f32 %v520, %v600
    %v602 = vpop.f32.mrb[0].mxu0
    %603 = vmatprep.mubr.f32.mxu0 0.0
    %v604 = vand.u32 %v80, 4294901760
    %605 = vmatmul.mubr.f32.gmra.mrb[0].mxu0 %v604
    %v606 = vpop.f32.mrb[0].mxu0
    %v607 = vadd.f32 %v526, %v606
    %v608 = vpop.f32.mrb[0].mxu0
    %609 = vdwg.mxu0
    %v610 = vmax.f32 %v601, %v607
    %v611 = vsub.f32 %v601, %v610
    %v612 = vmul.f32 %v611, 1.442695
    %v613 = vpow.pop %v612
    %v614 = vsub.f32 %v607, %v610
    %v615 = vmul.f32 %v614, 1.442695
    %v616 = vpow.pop %v615
    %v617 = vadd.f32 %v613, %v616
    %v618 = vrcp.pop %v617
    %v619 = vmul.f32 1.0, %v618
    %v620 = vmul.f32 %v613, %v619
    %621 = vst [vmem:[#allocation8] sm:$0xff] %v620
    %v622 = vmul.f32 %v616, %v619
    %623 = vst [vmem:[#allocation8 + $0x8] sm:$0xff] %v622
    %v624 = vld [vmem:[#allocation5] sm:$0xff]
    %v625 = vld [vmem:[#allocation5 + $0x8] sm:$0xff]
    %v627 = vsel %vm75, %v624, 0
    %629 = vmatprep.subr.mxu0 0.0
    %v630 = vand.u32 %v627, 4294901760
    %631 = vmatpush1.xpose.msra.mxu0 %v630
    %632 = vmatprep.subr.mxu0 0.0
    %633 = vmatpush1.xpose.msra.mxu0 0.0
    %634 = vmatprep.subr.mxu0 0.0
    %635 = vmatpush1.xpose.msra.mxu0 0.0
    %636 = vmatprep.subr.mxu0 0.0
    %637 = vmatpush1.xpose.msra.mxu0 0.0
    %638 = vmatprep.subr.mxu0 0.0
    %639 = vmatpush1.xpose.msra.mxu0 0.0
    %640 = vmatprep.subr.mxu0 0.0
    %641 = vmatpush1.xpose.msra.mxu0 0.0
    %642 = vmatprep.subr.mxu0 0.0
    %643 = vmatpush1.xpose.msra.mxu0 0.0
    %644 = vmatprep.subr.mxu0 0.0
    %645 = vmatpush1.xpose.msra.mxu0 0.0
    %646 = vmatprep.subr.mxu0 0.0
    %647 = vmatpush1.xpose.msra.mxu0 0.0
    %648 = vmatprep.subr.mxu0 0.0
    %649 = vmatpush1.xpose.msra.mxu0 0.0
    %650 = vmatprep.subr.mxu0 0.0
    %651 = vmatpush1.xpose.msra.mxu0 0.0
    %652 = vmatprep.subr.mxu0 0.0
    %653 = vmatpush1.xpose.msra.mxu0 0.0
    %654 = vmatprep.subr.mxu0 0.0
    %655 = vmatpush1.xpose.msra.mxu0 0.0
    %656 = vmatprep.subr.mxu0 0.0
    %657 = vmatpush1.xpose.msra.mxu0 0.0
    %658 = vmatprep.subr.mxu0 0.0
    %659 = vmatpush1.xpose.msra.mxu0 0.0
    %660 = vmatprep.subr.mxu0 0.0
    %661 = vmatpush1.xpose.msra.mxu0 0.0
    %662 = vmatprep.subr.mxu0 0.0
    %663 = vmatpush1.xpose.msra.mxu0 0.0
    %664 = vmatprep.subr.mxu0 0.0
    %665 = vmatpush1.xpose.msra.mxu0 0.0
    %666 = vmatprep.subr.mxu0 0.0
    %667 = vmatpush1.xpose.msra.mxu0 0.0
    %668 = vmatprep.subr.mxu0 0.0
    %669 = vmatpush1.xpose.msra.mxu0 0.0
    %670 = vmatprep.subr.mxu0 0.0
    %671 = vmatpush1.xpose.msra.mxu0 0.0
    %672 = vmatprep.subr.mxu0 0.0
    %673 = vmatpush1.xpose.msra.mxu0 0.0
    %674 = vmatprep.subr.mxu0 0.0
    %675 = vmatpush1.xpose.msra.mxu0 0.0
    %676 = vmatprep.subr.mxu0 0.0
    %677 = vmatpush1.xpose.msra.mxu0 0.0
    %678 = vmatprep.subr.mxu0 0.0
    %679 = vmatpush1.xpose.msra.mxu0 0.0
    %680 = vmatprep.subr.mxu0 0.0
    %681 = vmatpush1.xpose.msra.mxu0 0.0
    %682 = vmatprep.subr.mxu0 0.0
    %683 = vmatpush1.xpose.msra.mxu0 0.0
    %684 = vmatprep.subr.mxu0 0.0
    %685 = vmatpush1.xpose.msra.mxu0 0.0
    %686 = vmatprep.subr.mxu0 0.0
    %687 = vmatpush1.xpose.msra.mxu0 0.0
    %688 = vmatprep.subr.mxu0 0.0
    %689 = vmatpush1.xpose.msra.mxu0 0.0
    %690 = vmatprep.subr.mxu0 0.0
    %691 = vmatpush1.xpose.msra.mxu0 0.0
    %692 = vmatprep.subr.mxu0 0.0
    %693 = vmatpush1.xpose.msra.mxu0 0.0
    %694 = vmatprep.mubr.f32.mxu0 0.0
    %v695 = vand.u32 %v627, 4294901760
    %v696 = vsub.f32 %v627, %v695
    %v697 = vand.u32 %v696, 4294901760
    %v698 = vsub.f32 %v696, %v697
    %v699 = vand.u32 %v698, 4294901760
    %700 = vmatmul.mubr.f32.gmra.mrb[0].mxu0 %v699
    %v701 = vpop.f32.mrb[0].mxu0
    %v702 = vadd.f32 0.0, %v701
    %v703 = vpop.f32.mrb[0].mxu0
    %704 = vdwg.mxu0
    %705 = vmatprep.subr.mxu0 0.0
    %v706 = vand.u32 %v627, 4294901760
    %v707 = vsub.f32 %v627, %v706
    %v708 = vand.u32 %v707, 4294901760
    %v709 = vsub.f32 %v707, %v708
    %v710 = vand.u32 %v709, 4294901760
    %711 = vmatpush1.xpose.msra.mxu0 %v710
    %712 = vmatprep.subr.mxu0 0.0
    %713 = vmatpush1.xpose.msra.mxu0 0.0
    %714 = vmatprep.subr.mxu0 0.0
    %715 = vmatpush1.xpose.msra.mxu0 0.0
    %716 = vmatprep.subr.mxu0 0.0
    %717 = vmatpush1.xpose.msra.mxu0 0.0
    %718 = vmatprep.subr.mxu0 0.0
    %719 = vmatpush1.xpose.msra.mxu0 0.0
    %720 = vmatprep.subr.mxu0 0.0
    %721 = vmatpush1.xpose.msra.mxu0 0.0
    %722 = vmatprep.subr.mxu0 0.0
    %723 = vmatpush1.xpose.msra.mxu0 0.0
    %724 = vmatprep.subr.mxu0 0.0
    %725 = vmatpush1.xpose.msra.mxu0 0.0
    %726 = vmatprep.subr.mxu0 0.0
    %727 = vmatpush1.xpose.msra.mxu0 0.0
    %728 = vmatprep.subr.mxu0 0.0
    %729 = vmatpush1.xpose.msra.mxu0 0.0
    %730 = vmatprep.subr.mxu0 0.0
    %731 = vmatpush1.xpose.msra.mxu0 0.0
    %732 = vmatprep.subr.mxu0 0.0
    %733 = vmatpush1.xpose.msra.mxu0 0.0
    %734 = vmatprep.subr.mxu0 0.0
    %735 = vmatpush1.xpose.msra.mxu0 0.0
    %736 = vmatprep.subr.mxu0 0.0
    %737 = vmatpush1.xpose.msra.mxu0 0.0
    %738 = vmatprep.subr.mxu0 0.0
    %739 = vmatpush1.xpose.msra.mxu0 0.0
    %740 = vmatprep.subr.mxu0 0.0
    %741 = vmatpush1.xpose.msra.mxu0 0.0
    %742 = vmatprep.subr.mxu0 0.0
    %743 = vmatpush1.xpose.msra.mxu0 0.0
    %744 = vmatprep.subr.mxu0 0.0
    %745 = vmatpush1.xpose.msra.mxu0 0.0
    %746 = vmatprep.subr.mxu0 0.0
    %747 = vmatpush1.xpose.msra.mxu0 0.0
    %748 = vmatprep.subr.mxu0 0.0
    %749 = vmatpush1.xpose.msra.mxu0 0.0
    %750 = vmatprep.subr.mxu0 0.0
    %751 = vmatpush1.xpose.msra.mxu0 0.0
    %752 = vmatprep.subr.mxu0 0.0
    %753 = vmatpush1.xpose.msra.mxu0 0.0
    %754 = vmatprep.subr.mxu0 0.0
    %755 = vmatpush1.xpose.msra.mxu0 0.0
    %756 = vmatprep.subr.mxu0 0.0
    %757 = vmatpush1.xpose.msra.mxu0 0.0
    %758 = vmatprep.subr.mxu0 0.0
    %759 = vmatpush1.xpose.msra.mxu0 0.0
    %760 = vmatprep.subr.mxu0 0.0
    %761 = vmatpush1.xpose.msra.mxu0 0.0
    %762 = vmatprep.subr.mxu0 0.0
    %763 = vmatpush1.xpose.msra.mxu0 0.0
    %764 = vmatprep.subr.mxu0 0.0
    %765 = vmatpush1.xpose.msra.mxu0 0.0
    %766 = vmatprep.subr.mxu0 0.0
    %767 = vmatpush1.xpose.msra.mxu0 0.0
    %768 = vmatprep.subr.mxu0 0.0
    %769 = vmatpush1.xpose.msra.mxu0 0.0
    %770 = vmatprep.subr.mxu0 0.0
    %771 = vmatpush1.xpose.msra.mxu0 0.0
    %772 = vmatprep.subr.mxu0 0.0
    %773 = vmatpush1.xpose.msra.mxu0 0.0
    %774 = vmatprep.mubr.f32.mxu0 0.0
    %v775 = vand.u32 %v627, 4294901760
    %776 = vmatmul.mubr.f32.gmra.mrb[0].mxu0 %v775
    %v777 = vpop.f32.mrb[0].mxu0
    %v778 = vadd.f32 %v702, %v777
    %v779 = vpop.f32.mrb[0].mxu0
    %780 = vdwg.mxu0
    %781 = vmatprep.subr.mxu0 0.0
    %v782 = vand.u32 %v627, 4294901760
    %v783 = vsub.f32 %v627, %v782
    %784 = vmatpush1.xpose.msra.mxu0 %v783
    %785 = vmatprep.subr.mxu0 0.0
    %786 = vmatpush1.xpose.msra.mxu0 0.0
    %787 = vmatprep.subr.mxu0 0.0
    %788 = vmatpush1.xpose.msra.mxu0 0.0
    %789 = vmatprep.subr.mxu0 0.0
    %790 = vmatpush1.xpose.msra.mxu0 0.0
    %791 = vmatprep.subr.mxu0 0.0
    %792 = vmatpush1.xpose.msra.mxu0 0.0
    %793 = vmatprep.subr.mxu0 0.0
    %794 = vmatpush1.xpose.msra.mxu0 0.0
    %795 = vmatprep.subr.mxu0 0.0
    %796 = vmatpush1.xpose.msra.mxu0 0.0
    %797 = vmatprep.subr.mxu0 0.0
    %798 = vmatpush1.xpose.msra.mxu0 0.0
    %799 = vmatprep.subr.mxu0 0.0
    %800 = vmatpush1.xpose.msra.mxu0 0.0
    %801 = vmatprep.subr.mxu0 0.0
    %802 = vmatpush1.xpose.msra.mxu0 0.0
    %803 = vmatprep.subr.mxu0 0.0
    %804 = vmatpush1.xpose.msra.mxu0 0.0
    %805 = vmatprep.subr.mxu0 0.0
    %806 = vmatpush1.xpose.msra.mxu0 0.0
    %807 = vmatprep.subr.mxu0 0.0
    %808 = vmatpush1.xpose.msra.mxu0 0.0
    %809 = vmatprep.subr.mxu0 0.0
    %810 = vmatpush1.xpose.msra.mxu0 0.0
    %811 = vmatprep.subr.mxu0 0.0
    %812 = vmatpush1.xpose.msra.mxu0 0.0
    %813 = vmatprep.subr.mxu0 0.0
    %814 = vmatpush1.xpose.msra.mxu0 0.0
    %815 = vmatprep.subr.mxu0 0.0
    %816 = vmatpush1.xpose.msra.mxu0 0.0
    %817 = vmatprep.subr.mxu0 0.0
    %818 = vmatpush1.xpose.msra.mxu0 0.0
    %819 = vmatprep.subr.mxu0 0.0
    %820 = vmatpush1.xpose.msra.mxu0 0.0
    %821 = vmatprep.subr.mxu0 0.0
    %822 = vmatpush1.xpose.msra.mxu0 0.0
    %823 = vmatprep.subr.mxu0 0.0
    %824 = vmatpush1.xpose.msra.mxu0 0.0
    %825 = vmatprep.subr.mxu0 0.0
    %826 = vmatpush1.xpose.msra.mxu0 0.0
    %827 = vmatprep.subr.mxu0 0.0
    %828 = vmatpush1.xpose.msra.mxu0 0.0
    %829 = vmatprep.subr.mxu0 0.0
    %830 = vmatpush1.xpose.msra.mxu0 0.0
    %831 = vmatprep.subr.mxu0 0.0
    %832 = vmatpush1.xpose.msra.mxu0 0.0
    %833 = vmatprep.subr.mxu0 0.0
    %834 = vmatpush1.xpose.msra.mxu0 0.0
    %835 = vmatprep.subr.mxu0 0.0
    %836 = vmatpush1.xpose.msra.mxu0 0.0
    %837 = vmatprep.subr.mxu0 0.0
    %838 = vmatpush1.xpose.msra.mxu0 0.0
    %839 = vmatprep.subr.mxu0 0.0
    %840 = vmatpush1.xpose.msra.mxu0 0.0
    %841 = vmatprep.subr.mxu0 0.0
    %842 = vmatpush1.xpose.msra.mxu0 0.0
    %843 = vmatprep.subr.mxu0 0.0
    %844 = vmatpush1.xpose.msra.mxu0 0.0
    %845 = vmatprep.subr.mxu0 0.0
    %846 = vmatpush1.xpose.msra.mxu0 0.0
    %847 = vmatprep.mubr.f32.mxu0 0.0
    %v848 = vand.u32 %v627, 4294901760
    %v849 = vsub.f32 %v627, %v848
    %850 = vmatmul.mubr.f32.gmra.mrb[0].mxu0 %v849
    %v851 = vpop.f32.mrb[0].mxu0
    %v852 = vadd.f32 %v778, %v851
    %v853 = vpop.f32.mrb[0].mxu0
    %854 = vdwg.mxu0
    %855 = vmatprep.subr.mxu0 0.0
    %v856 = vand.u32 %v627, 4294901760
    %857 = vmatpush1.xpose.msra.mxu0 %v856
    %858 = vmatprep.subr.mxu0 0.0
    %859 = vmatpush1.xpose.msra.mxu0 0.0
    %860 = vmatprep.subr.mxu0 0.0
    %861 = vmatpush1.xpose.msra.mxu0 0.0
    %862 = vmatprep.subr.mxu0 0.0
    %863 = vmatpush1.xpose.msra.mxu0 0.0
    %864 = vmatprep.subr.mxu0 0.0
    %865 = vmatpush1.xpose.msra.mxu0 0.0
    %866 = vmatprep.subr.mxu0 0.0
    %867 = vmatpush1.xpose.msra.mxu0 0.0
    %868 = vmatprep.subr.mxu0 0.0
    %869 = vmatpush1.xpose.msra.mxu0 0.0
    %870 = vmatprep.subr.mxu0 0.0
    %871 = vmatpush1.xpose.msra.mxu0 0.0
    %872 = vmatprep.subr.mxu0 0.0
    %873 = vmatpush1.xpose.msra.mxu0 0.0
    %874 = vmatprep.subr.mxu0 0.0
    %875 = vmatpush1.xpose.msra.mxu0 0.0
    %876 = vmatprep.subr.mxu0 0.0
    %877 = vmatpush1.xpose.msra.mxu0 0.0
    %878 = vmatprep.subr.mxu0 0.0
    %879 = vmatpush1.xpose.msra.mxu0 0.0
    %880 = vmatprep.subr.mxu0 0.0
    %881 = vmatpush1.xpose.msra.mxu0 0.0
    %882 = vmatprep.subr.mxu0 0.0
    %883 = vmatpush1.xpose.msra.mxu0 0.0
    %884 = vmatprep.subr.mxu0 0.0
    %885 = vmatpush1.xpose.msra.mxu0 0.0
    %886 = vmatprep.subr.mxu0 0.0
    %887 = vmatpush1.xpose.msra.mxu0 0.0
    %888 = vmatprep.subr.mxu0 0.0
    %889 = vmatpush1.xpose.msra.mxu0 0.0
    %890 = vmatprep.subr.mxu0 0.0
    %891 = vmatpush1.xpose.msra.mxu0 0.0
    %892 = vmatprep.subr.mxu0 0.0
    %893 = vmatpush1.xpose.msra.mxu0 0.0
    %894 = vmatprep.subr.mxu0 0.0
    %895 = vmatpush1.xpose.msra.mxu0 0.0
    %896 = vmatprep.subr.mxu0 0.0
    %897 = vmatpush1.xpose.msra.mxu0 0.0
    %898 = vmatprep.subr.mxu0 0.0
    %899 = vmatpush1.xpose.msra.mxu0 0.0
    %900 = vmatprep.subr.mxu0 0.0
    %901 = vmatpush1.xpose.msra.mxu0 0.0
    %902 = vmatprep.subr.mxu0 0.0
    %903 = vmatpush1.xpose.msra.mxu0 0.0
    %904 = vmatprep.subr.mxu0 0.0
    %905 = vmatpush1.xpose.msra.mxu0 0.0
    %906 = vmatprep.subr.mxu0 0.0
    %907 = vmatpush1.xpose.msra.mxu0 0.0
    %908 = vmatprep.subr.mxu0 0.0
    %909 = vmatpush1.xpose.msra.mxu0 0.0
    %910 = vmatprep.subr.mxu0 0.0
    %911 = vmatpush1.xpose.msra.mxu0 0.0
    %912 = vmatprep.subr.mxu0 0.0
    %913 = vmatpush1.xpose.msra.mxu0 0.0
    %914 = vmatprep.subr.mxu0 0.0
    %915 = vmatpush1.xpose.msra.mxu0 0.0
    %916 = vmatprep.subr.mxu0 0.0
    %917 = vmatpush1.xpose.msra.mxu0 0.0
    %918 = vmatprep.subr.mxu0 0.0
    %919 = vmatpush1.xpose.msra.mxu0 0.0
    %920 = vmatprep.mubr.f32.mxu0 0.0
    %v921 = vand.u32 %v627, 4294901760
    %v922 = vsub.f32 %v627, %v921
    %v923 = vand.u32 %v922, 4294901760
    %924 = vmatmul.mubr.f32.gmra.mrb[0].mxu0 %v923
    %v925 = vpop.f32.mrb[0].mxu0
    %v926 = vadd.f32 %v852, %v925
    %v927 = vpop.f32.mrb[0].mxu0
    %928 = vdwg.mxu0
    %929 = vmatprep.subr.mxu0 0.0
    %v930 = vand.u32 %v627, 4294901760
    %v931 = vsub.f32 %v627, %v930
    %v932 = vand.u32 %v931, 4294901760
    %933 = vmatpush1.xpose.msra.mxu0 %v932
    %934 = vmatprep.subr.mxu0 0.0
    %935 = vmatpush1.xpose.msra.mxu0 0.0
    %936 = vmatprep.subr.mxu0 0.0
    %937 = vmatpush1.xpose.msra.mxu0 0.0
    %938 = vmatprep.subr.mxu0 0.0
    %939 = vmatpush1.xpose.msra.mxu0 0.0
    %940 = vmatprep.subr.mxu0 0.0
    %941 = vmatpush1.xpose.msra.mxu0 0.0
    %942 = vmatprep.subr.mxu0 0.0
    %943 = vmatpush1.xpose.msra.mxu0 0.0
    %944 = vmatprep.subr.mxu0 0.0
    %945 = vmatpush1.xpose.msra.mxu0 0.0
    %946 = vmatprep.subr.mxu0 0.0
    %947 = vmatpush1.xpose.msra.mxu0 0.0
    %948 = vmatprep.subr.mxu0 0.0
    %949 = vmatpush1.xpose.msra.mxu0 0.0
    %950 = vmatprep.subr.mxu0 0.0
    %951 = vmatpush1.xpose.msra.mxu0 0.0
    %952 = vmatprep.subr.mxu0 0.0
    %953 = vmatpush1.xpose.msra.mxu0 0.0
    %954 = vmatprep.subr.mxu0 0.0
    %955 = vmatpush1.xpose.msra.mxu0 0.0
    %956 = vmatprep.subr.mxu0 0.0
    %957 = vmatpush1.xpose.msra.mxu0 0.0
    %958 = vmatprep.subr.mxu0 0.0
    %959 = vmatpush1.xpose.msra.mxu0 0.0
    %960 = vmatprep.subr.mxu0 0.0
    %961 = vmatpush1.xpose.msra.mxu0 0.0
    %962 = vmatprep.subr.mxu0 0.0
    %963 = vmatpush1.xpose.msra.mxu0 0.0
    %964 = vmatprep.subr.mxu0 0.0
    %965 = vmatpush1.xpose.msra.mxu0 0.0
    %966 = vmatprep.subr.mxu0 0.0
    %967 = vmatpush1.xpose.msra.mxu0 0.0
    %968 = vmatprep.subr.mxu0 0.0
    %969 = vmatpush1.xpose.msra.mxu0 0.0
    %970 = vmatprep.subr.mxu0 0.0
    %971 = vmatpush1.xpose.msra.mxu0 0.0
    %972 = vmatprep.subr.mxu0 0.0
    %973 = vmatpush1.xpose.msra.mxu0 0.0
    %974 = vmatprep.subr.mxu0 0.0
    %975 = vmatpush1.xpose.msra.mxu0 0.0
    %976 = vmatprep.subr.mxu0 0.0
    %977 = vmatpush1.xpose.msra.mxu0 0.0
    %978 = vmatprep.subr.mxu0 0.0
    %979 = vmatpush1.xpose.msra.mxu0 0.0
    %980 = vmatprep.subr.mxu0 0.0
    %981 = vmatpush1.xpose.msra.mxu0 0.0
    %982 = vmatprep.subr.mxu0 0.0
    %983 = vmatpush1.xpose.msra.mxu0 0.0
    %984 = vmatprep.subr.mxu0 0.0
    %985 = vmatpush1.xpose.msra.mxu0 0.0
    %986 = vmatprep.subr.mxu0 0.0
    %987 = vmatpush1.xpose.msra.mxu0 0.0
    %988 = vmatprep.subr.mxu0 0.0
    %989 = vmatpush1.xpose.msra.mxu0 0.0
    %990 = vmatprep.subr.mxu0 0.0
    %991 = vmatpush1.xpose.msra.mxu0 0.0
    %992 = vmatprep.subr.mxu0 0.0
    %993 = vmatpush1.xpose.msra.mxu0 0.0
    %994 = vmatprep.subr.mxu0 0.0
    %995 = vmatpush1.xpose.msra.mxu0 0.0
    %996 = vmatprep.mubr.f32.mxu0 0.0
    %v997 = vand.u32 %v627, 4294901760
    %998 = vmatmul.mubr.f32.gmra.mrb[0].mxu0 %v997
    %v999 = vpop.f32.mrb[0].mxu0
    %v1000 = vadd.f32 %v926, %v999
    %v1001 = vpop.f32.mrb[0].mxu0
    %1002 = vdwg.mxu0
    %1003 = vmatprep.subr.mxu0 0.0
    %v1004 = vand.u32 %v627, 4294901760
    %1005 = vmatpush1.xpose.msra.mxu0 %v1004
    %1006 = vmatprep.subr.mxu0 0.0
    %1007 = vmatpush1.xpose.msra.mxu0 0.0
    %1008 = vmatprep.subr.mxu0 0.0
    %1009 = vmatpush1.xpose.msra.mxu0 0.0
    %1010 = vmatprep.subr.mxu0 0.0
    %1011 = vmatpush1.xpose.msra.mxu0 0.0
    %1012 = vmatprep.subr.mxu0 0.0
    %1013 = vmatpush1.xpose.msra.mxu0 0.0
    %1014 = vmatprep.subr.mxu0 0.0
    %1015 = vmatpush1.xpose.msra.mxu0 0.0
    %1016 = vmatprep.subr.mxu0 0.0
    %1017 = vmatpush1.xpose.msra.mxu0 0.0
    %1018 = vmatprep.subr.mxu0 0.0
    %1019 = vmatpush1.xpose.msra.mxu0 0.0
    %1020 = vmatprep.subr.mxu0 0.0
    %1021 = vmatpush1.xpose.msra.mxu0 0.0
    %1022 = vmatprep.subr.mxu0 0.0
    %1023 = vmatpush1.xpose.msra.mxu0 0.0
    %1024 = vmatprep.subr.mxu0 0.0
    %1025 = vmatpush1.xpose.msra.mxu0 0.0
    %1026 = vmatprep.subr.mxu0 0.0
    %1027 = vmatpush1.xpose.msra.mxu0 0.0
    %1028 = vmatprep.subr.mxu0 0.0
    %1029 = vmatpush1.xpose.msra.mxu0 0.0
    %1030 = vmatprep.subr.mxu0 0.0
    %1031 = vmatpush1.xpose.msra.mxu0 0.0
    %1032 = vmatprep.subr.mxu0 0.0
    %1033 = vmatpush1.xpose.msra.mxu0 0.0
    %1034 = vmatprep.subr.mxu0 0.0
    %1035 = vmatpush1.xpose.msra.mxu0 0.0
    %1036 = vmatprep.subr.mxu0 0.0
    %1037 = vmatpush1.xpose.msra.mxu0 0.0
    %1038 = vmatprep.subr.mxu0 0.0
    %1039 = vmatpush1.xpose.msra.mxu0 0.0
    %1040 = vmatprep.subr.mxu0 0.0
    %1041 = vmatpush1.xpose.msra.mxu0 0.0
    %1042 = vmatprep.subr.mxu0 0.0
    %1043 = vmatpush1.xpose.msra.mxu0 0.0
    %1044 = vmatprep.subr.mxu0 0.0
    %1045 = vmatpush1.xpose.msra.mxu0 0.0
    %1046 = vmatprep.subr.mxu0 0.0
    %1047 = vmatpush1.xpose.msra.mxu0 0.0
    %1048 = vmatprep.subr.mxu0 0.0
    %1049 = vmatpush1.xpose.msra.mxu0 0.0
    %1050 = vmatprep.subr.mxu0 0.0
    %1051 = vmatpush1.xpose.msra.mxu0 0.0
    %1052 = vmatprep.subr.mxu0 0.0
    %1053 = vmatpush1.xpose.msra.mxu0 0.0
    %1054 = vmatprep.subr.mxu0 0.0
    %1055 = vmatpush1.xpose.msra.mxu0 0.0
    %1056 = vmatprep.subr.mxu0 0.0
    %1057 = vmatpush1.xpose.msra.mxu0 0.0
    %1058 = vmatprep.subr.mxu0 0.0
    %1059 = vmatpush1.xpose.msra.mxu0 0.0
    %1060 = vmatprep.subr.mxu0 0.0
    %1061 = vmatpush1.xpose.msra.mxu0 0.0
    %1062 = vmatprep.subr.mxu0 0.0
    %1063 = vmatpush1.xpose.msra.mxu0 0.0
    %1064 = vmatprep.subr.mxu0 0.0
    %1065 = vmatpush1.xpose.msra.mxu0 0.0
    %1066 = vmatprep.subr.mxu0 0.0
    %1067 = vmatpush1.xpose.msra.mxu0 0.0
    %1068 = vmatprep.mubr.f32.mxu0 0.0
    %v1069 = vand.u32 %v627, 4294901760
    %1070 = vmatmul.mubr.f32.gmra.mrb[0].mxu0 %v1069
    %v1071 = vpop.f32.mrb[0].mxu0
    %v1072 = vadd.f32 %v1000, %v1071
    %v1073 = vpop.f32.mrb[0].mxu0
    %1074 = vdwg.mxu0
    %v1076 = vsel %vm75, %v625, 0
    %1078 = vmatprep.subr.mxu0 0.0
    %v1079 = vand.u32 %v1076, 4294901760
    %1080 = vmatpush1.xpose.msra.mxu0 %v1079
    %1081 = vmatprep.subr.mxu0 0.0
    %1082 = vmatpush1.xpose.msra.mxu0 0.0
    %1083 = vmatprep.subr.mxu0 0.0
    %1084 = vmatpush1.xpose.msra.mxu0 0.0
    %1085 = vmatprep.subr.mxu0 0.0
    %1086 = vmatpush1.xpose.msra.mxu0 0.0
    %1087 = vmatprep.subr.mxu0 0.0
    %1088 = vmatpush1.xpose.msra.mxu0 0.0
    %1089 = vmatprep.subr.mxu0 0.0
    %1090 = vmatpush1.xpose.msra.mxu0 0.0
    %1091 = vmatprep.subr.mxu0 0.0
    %1092 = vmatpush1.xpose.msra.mxu0 0.0
    %1093 = vmatprep.subr.mxu0 0.0
    %1094 = vmatpush1.xpose.msra.mxu0 0.0
    %1095 = vmatprep.subr.mxu0 0.0
    %1096 = vmatpush1.xpose.msra.mxu0 0.0
    %1097 = vmatprep.subr.mxu0 0.0
    %1098 = vmatpush1.xpose.msra.mxu0 0.0
    %1099 = vmatprep.subr.mxu0 0.0
    %1100 = vmatpush1.xpose.msra.mxu0 0.0
    %1101 = vmatprep.subr.mxu0 0.0
    %1102 = vmatpush1.xpose.msra.mxu0 0.0
    %1103 = vmatprep.subr.mxu0 0.0
    %1104 = vmatpush1.xpose.msra.mxu0 0.0
    %1105 = vmatprep.subr.mxu0 0.0
    %1106 = vmatpush1.xpose.msra.mxu0 0.0
    %1107 = vmatprep.subr.mxu0 0.0
    %1108 = vmatpush1.xpose.msra.mxu0 0.0
    %1109 = vmatprep.subr.mxu0 0.0
    %1110 = vmatpush1.xpose.msra.mxu0 0.0
    %1111 = vmatprep.subr.mxu0 0.0
    %1112 = vmatpush1.xpose.msra.mxu0 0.0
    %1113 = vmatprep.subr.mxu0 0.0
    %1114 = vmatpush1.xpose.msra.mxu0 0.0
    %1115 = vmatprep.subr.mxu0 0.0
    %1116 = vmatpush1.xpose.msra.mxu0 0.0
    %1117 = vmatprep.subr.mxu0 0.0
    %1118 = vmatpush1.xpose.msra.mxu0 0.0
    %1119 = vmatprep.subr.mxu0 0.0
    %1120 = vmatpush1.xpose.msra.mxu0 0.0
    %1121 = vmatprep.subr.mxu0 0.0
    %1122 = vmatpush1.xpose.msra.mxu0 0.0
    %1123 = vmatprep.subr.mxu0 0.0
    %1124 = vmatpush1.xpose.msra.mxu0 0.0
    %1125 = vmatprep.subr.mxu0 0.0
    %1126 = vmatpush1.xpose.msra.mxu0 0.0
    %1127 = vmatprep.subr.mxu0 0.0
    %1128 = vmatpush1.xpose.msra.mxu0 0.0
    %1129 = vmatprep.subr.mxu0 0.0
    %1130 = vmatpush1.xpose.msra.mxu0 0.0
    %1131 = vmatprep.subr.mxu0 0.0
    %1132 = vmatpush1.xpose.msra.mxu0 0.0
    %1133 = vmatprep.subr.mxu0 0.0
    %1134 = vmatpush1.xpose.msra.mxu0 0.0
    %1135 = vmatprep.subr.mxu0 0.0
    %1136 = vmatpush1.xpose.msra.mxu0 0.0
    %1137 = vmatprep.subr.mxu0 0.0
    %1138 = vmatpush1.xpose.msra.mxu0 0.0
    %1139 = vmatprep.subr.mxu0 0.0
    %1140 = vmatpush1.xpose.msra.mxu0 0.0
    %1141 = vmatprep.subr.mxu0 0.0
    %1142 = vmatpush1.xpose.msra.mxu0 0.0
    %1143 = vmatprep.mubr.f32.mxu0 0.0
    %v1144 = vand.u32 %v1076, 4294901760
    %v1145 = vsub.f32 %v1076, %v1144
    %v1146 = vand.u32 %v1145, 4294901760
    %v1147 = vsub.f32 %v1145, %v1146
    %v1148 = vand.u32 %v1147, 4294901760
    %1149 = vmatmul.mubr.f32.gmra.mrb[0].mxu0 %v1148
    %v1150 = vpop.f32.mrb[0].mxu0
    %v1151 = vadd.f32 0.0, %v1150
    %v1152 = vpop.f32.mrb[0].mxu0
    %1153 = vdwg.mxu0
    %1154 = vmatprep.subr.mxu0 0.0
    %v1155 = vand.u32 %v1076, 4294901760
    %v1156 = vsub.f32 %v1076, %v1155
    %v1157 = vand.u32 %v1156, 4294901760
    %v1158 = vsub.f32 %v1156, %v1157
    %v1159 = vand.u32 %v1158, 4294901760
    %1160 = vmatpush1.xpose.msra.mxu0 %v1159
    %1161 = vmatprep.subr.mxu0 0.0
    %1162 = vmatpush1.xpose.msra.mxu0 0.0
    %1163 = vmatprep.subr.mxu0 0.0
    %1164 = vmatpush1.xpose.msra.mxu0 0.0
    %1165 = vmatprep.subr.mxu0 0.0
    %1166 = vmatpush1.xpose.msra.mxu0 0.0
    %1167 = vmatprep.subr.mxu0 0.0
    %1168 = vmatpush1.xpose.msra.mxu0 0.0
    %1169 = vmatprep.subr.mxu0 0.0
    %1170 = vmatpush1.xpose.msra.mxu0 0.0
    %1171 = vmatprep.subr.mxu0 0.0
    %1172 = vmatpush1.xpose.msra.mxu0 0.0
    %1173 = vmatprep.subr.mxu0 0.0
    %1174 = vmatpush1.xpose.msra.mxu0 0.0
    %1175 = vmatprep.subr.mxu0 0.0
    %1176 = vmatpush1.xpose.msra.mxu0 0.0
    %1177 = vmatprep.subr.mxu0 0.0
    %1178 = vmatpush1.xpose.msra.mxu0 0.0
    %1179 = vmatprep.subr.mxu0 0.0
    %1180 = vmatpush1.xpose.msra.mxu0 0.0
    %1181 = vmatprep.subr.mxu0 0.0
    %1182 = vmatpush1.xpose.msra.mxu0 0.0
    %1183 = vmatprep.subr.mxu0 0.0
    %1184 = vmatpush1.xpose.msra.mxu0 0.0
    %1185 = vmatprep.subr.mxu0 0.0
    %1186 = vmatpush1.xpose.msra.mxu0 0.0
    %1187 = vmatprep.subr.mxu0 0.0
    %1188 = vmatpush1.xpose.msra.mxu0 0.0
    %1189 = vmatprep.subr.mxu0 0.0
    %1190 = vmatpush1.xpose.msra.mxu0 0.0
    %1191 = vmatprep.subr.mxu0 0.0
    %1192 = vmatpush1.xpose.msra.mxu0 0.0
    %1193 = vmatprep.subr.mxu0 0.0
    %1194 = vmatpush1.xpose.msra.mxu0 0.0
    %1195 = vmatprep.subr.mxu0 0.0
    %1196 = vmatpush1.xpose.msra.mxu0 0.0
    %1197 = vmatprep.subr.mxu0 0.0
    %1198 = vmatpush1.xpose.msra.mxu0 0.0
    %1199 = vmatprep.subr.mxu0 0.0
    %1200 = vmatpush1.xpose.msra.mxu0 0.0
    %1201 = vmatprep.subr.mxu0 0.0
    %1202 = vmatpush1.xpose.msra.mxu0 0.0
    %1203 = vmatprep.subr.mxu0 0.0
    %1204 = vmatpush1.xpose.msra.mxu0 0.0
    %1205 = vmatprep.subr.mxu0 0.0
    %1206 = vmatpush1.xpose.msra.mxu0 0.0
    %1207 = vmatprep.subr.mxu0 0.0
    %1208 = vmatpush1.xpose.msra.mxu0 0.0
    %1209 = vmatprep.subr.mxu0 0.0
    %1210 = vmatpush1.xpose.msra.mxu0 0.0
    %1211 = vmatprep.subr.mxu0 0.0
    %1212 = vmatpush1.xpose.msra.mxu0 0.0
    %1213 = vmatprep.subr.mxu0 0.0
    %1214 = vmatpush1.xpose.msra.mxu0 0.0
    %1215 = vmatprep.subr.mxu0 0.0
    %1216 = vmatpush1.xpose.msra.mxu0 0.0
    %1217 = vmatprep.subr.mxu0 0.0
    %1218 = vmatpush1.xpose.msra.mxu0 0.0
    %1219 = vmatprep.subr.mxu0 0.0
    %1220 = vmatpush1.xpose.msra.mxu0 0.0
    %1221 = vmatprep.subr.mxu0 0.0
    %1222 = vmatpush1.xpose.msra.mxu0 0.0
    %1223 = vmatprep.mubr.f32.mxu0 0.0
    %v1224 = vand.u32 %v1076, 4294901760
    %1225 = vmatmul.mubr.f32.gmra.mrb[0].mxu0 %v1224
    %v1226 = vpop.f32.mrb[0].mxu0
    %v1227 = vadd.f32 %v1151, %v1226
    %v1228 = vpop.f32.mrb[0].mxu0
    %1229 = vdwg.mxu0
    %1230 = vmatprep.subr.mxu0 0.0
    %v1231 = vand.u32 %v1076, 4294901760
    %v1232 = vsub.f32 %v1076, %v1231
    %1233 = vmatpush1.xpose.msra.mxu0 %v1232
    %1234 = vmatprep.subr.mxu0 0.0
    %1235 = vmatpush1.xpose.msra.mxu0 0.0
    %1236 = vmatprep.subr.mxu0 0.0
    %1237 = vmatpush1.xpose.msra.mxu0 0.0
    %1238 = vmatprep.subr.mxu0 0.0
    %1239 = vmatpush1.xpose.msra.mxu0 0.0
    %1240 = vmatprep.subr.mxu0 0.0
    %1241 = vmatpush1.xpose.msra.mxu0 0.0
    %1242 = vmatprep.subr.mxu0 0.0
    %1243 = vmatpush1.xpose.msra.mxu0 0.0
    %1244 = vmatprep.subr.mxu0 0.0
    %1245 = vmatpush1.xpose.msra.mxu0 0.0
    %1246 = vmatprep.subr.mxu0 0.0
    %1247 = vmatpush1.xpose.msra.mxu0 0.0
    %1248 = vmatprep.subr.mxu0 0.0
    %1249 = vmatpush1.xpose.msra.mxu0 0.0
    %1250 = vmatprep.subr.mxu0 0.0
    %1251 = vmatpush1.xpose.msra.mxu0 0.0
    %1252 = vmatprep.subr.mxu0 0.0
    %1253 = vmatpush1.xpose.msra.mxu0 0.0
    %1254 = vmatprep.subr.mxu0 0.0
    %1255 = vmatpush1.xpose.msra.mxu0 0.0
    %1256 = vmatprep.subr.mxu0 0.0
    %1257 = vmatpush1.xpose.msra.mxu0 0.0
    %1258 = vmatprep.subr.mxu0 0.0
    %1259 = vmatpush1.xpose.msra.mxu0 0.0
    %1260 = vmatprep.subr.mxu0 0.0
    %1261 = vmatpush1.xpose.msra.mxu0 0.0
    %1262 = vmatprep.subr.mxu0 0.0
    %1263 = vmatpush1.xpose.msra.mxu0 0.0
    %1264 = vmatprep.subr.mxu0 0.0
    %1265 = vmatpush1.xpose.msra.mxu0 0.0
    %1266 = vmatprep.subr.mxu0 0.0
    %1267 = vmatpush1.xpose.msra.mxu0 0.0
    %1268 = vmatprep.subr.mxu0 0.0
    %1269 = vmatpush1.xpose.msra.mxu0 0.0
    %1270 = vmatprep.subr.mxu0 0.0
    %1271 = vmatpush1.xpose.msra.mxu0 0.0
    %1272 = vmatprep.subr.mxu0 0.0
    %1273 = vmatpush1.xpose.msra.mxu0 0.0
    %1274 = vmatprep.subr.mxu0 0.0
    %1275 = vmatpush1.xpose.msra.mxu0 0.0
    %1276 = vmatprep.subr.mxu0 0.0
    %1277 = vmatpush1.xpose.msra.mxu0 0.0
    %1278 = vmatprep.subr.mxu0 0.0
    %1279 = vmatpush1.xpose.msra.mxu0 0.0
    %1280 = vmatprep.subr.mxu0 0.0
    %1281 = vmatpush1.xpose.msra.mxu0 0.0
    %1282 = vmatprep.subr.mxu0 0.0
    %1283 = vmatpush1.xpose.msra.mxu0 0.0
    %1284 = vmatprep.subr.mxu0 0.0
    %1285 = vmatpush1.xpose.msra.mxu0 0.0
    %1286 = vmatprep.subr.mxu0 0.0
    %1287 = vmatpush1.xpose.msra.mxu0 0.0
    %1288 = vmatprep.subr.mxu0 0.0
    %1289 = vmatpush1.xpose.msra.mxu0 0.0
    %1290 = vmatprep.subr.mxu0 0.0
    %1291 = vmatpush1.xpose.msra.mxu0 0.0
    %1292 = vmatprep.subr.mxu0 0.0
    %1293 = vmatpush1.xpose.msra.mxu0 0.0
    %1294 = vmatprep.subr.mxu0 0.0
    %1295 = vmatpush1.xpose.msra.mxu0 0.0
    %1296 = vmatprep.mubr.f32.mxu0 0.0
    %v1297 = vand.u32 %v1076, 4294901760
    %v1298 = vsub.f32 %v1076, %v1297
    %1299 = vmatmul.mubr.f32.gmra.mrb[0].mxu0 %v1298
    %v1300 = vpop.f32.mrb[0].mxu0
    %v1301 = vadd.f32 %v1227, %v1300
    %v1302 = vpop.f32.mrb[0].mxu0
    %1303 = vdwg.mxu0
    %1304 = vmatprep.subr.mxu0 0.0
    %v1305 = vand.u32 %v1076, 4294901760
    %1306 = vmatpush1.xpose.msra.mxu0 %v1305
    %1307 = vmatprep.subr.mxu0 0.0
    %1308 = vmatpush1.xpose.msra.mxu0 0.0
    %1309 = vmatprep.subr.mxu0 0.0
    %1310 = vmatpush1.xpose.msra.mxu0 0.0
    %1311 = vmatprep.subr.mxu0 0.0
    %1312 = vmatpush1.xpose.msra.mxu0 0.0
    %1313 = vmatprep.subr.mxu0 0.0
    %1314 = vmatpush1.xpose.msra.mxu0 0.0
    %1315 = vmatprep.subr.mxu0 0.0
    %1316 = vmatpush1.xpose.msra.mxu0 0.0
    %1317 = vmatprep.subr.mxu0 0.0
    %1318 = vmatpush1.xpose.msra.mxu0 0.0
    %1319 = vmatprep.subr.mxu0 0.0
    %1320 = vmatpush1.xpose.msra.mxu0 0.0
    %1321 = vmatprep.subr.mxu0 0.0
    %1322 = vmatpush1.xpose.msra.mxu0 0.0
    %1323 = vmatprep.subr.mxu0 0.0
    %1324 = vmatpush1.xpose.msra.mxu0 0.0
    %1325 = vmatprep.subr.mxu0 0.0
    %1326 = vmatpush1.xpose.msra.mxu0 0.0
    %1327 = vmatprep.subr.mxu0 0.0
    %1328 = vmatpush1.xpose.msra.mxu0 0.0
    %1329 = vmatprep.subr.mxu0 0.0
    %1330 = vmatpush1.xpose.msra.mxu0 0.0
    %1331 = vmatprep.subr.mxu0 0.0
    %1332 = vmatpush1.xpose.msra.mxu0 0.0
    %1333 = vmatprep.subr.mxu0 0.0
    %1334 = vmatpush1.xpose.msra.mxu0 0.0
    %1335 = vmatprep.subr.mxu0 0.0
    %1336 = vmatpush1.xpose.msra.mxu0 0.0
    %1337 = vmatprep.subr.mxu0 0.0
    %1338 = vmatpush1.xpose.msra.mxu0 0.0
    %1339 = vmatprep.subr.mxu0 0.0
    %1340 = vmatpush1.xpose.msra.mxu0 0.0
    %1341 = vmatprep.subr.mxu0 0.0
    %1342 = vmatpush1.xpose.msra.mxu0 0.0
    %1343 = vmatprep.subr.mxu0 0.0
    %1344 = vmatpush1.xpose.msra.mxu0 0.0
    %1345 = vmatprep.subr.mxu0 0.0
    %1346 = vmatpush1.xpose.msra.mxu0 0.0
    %1347 = vmatprep.subr.mxu0 0.0
    %1348 = vmatpush1.xpose.msra.mxu0 0.0
    %1349 = vmatprep.subr.mxu0 0.0
    %1350 = vmatpush1.xpose.msra.mxu0 0.0
    %1351 = vmatprep.subr.mxu0 0.0
    %1352 = vmatpush1.xpose.msra.mxu0 0.0
    %1353 = vmatprep.subr.mxu0 0.0
    %1354 = vmatpush1.xpose.msra.mxu0 0.0
    %1355 = vmatprep.subr.mxu0 0.0
    %1356 = vmatpush1.xpose.msra.mxu0 0.0
    %1357 = vmatprep.subr.mxu0 0.0
    %1358 = vmatpush1.xpose.msra.mxu0 0.0
    %1359 = vmatprep.subr.mxu0 0.0
    %1360 = vmatpush1.xpose.msra.mxu0 0.0
    %1361 = vmatprep.subr.mxu0 0.0
    %1362 = vmatpush1.xpose.msra.mxu0 0.0
    %1363 = vmatprep.subr.mxu0 0.0
    %1364 = vmatpush1.xpose.msra.mxu0 0.0
    %1365 = vmatprep.subr.mxu0 0.0
    %1366 = vmatpush1.xpose.msra.mxu0 0.0
    %1367 = vmatprep.subr.mxu0 0.0
    %1368 = vmatpush1.xpose.msra.mxu0 0.0
    %1369 = vmatprep.mubr.f32.mxu0 0.0
    %v1370 = vand.u32 %v1076, 4294901760
    %v1371 = vsub.f32 %v1076, %v1370
    %v1372 = vand.u32 %v1371, 4294901760
    %1373 = vmatmul.mubr.f32.gmra.mrb[0].mxu0 %v1372
    %v1374 = vpop.f32.mrb[0].mxu0
    %v1375 = vadd.f32 %v1301, %v1374
    %v1376 = vpop.f32.mrb[0].mxu0
    %1377 = vdwg.mxu0
    %1378 = vmatprep.subr.mxu0 0.0
    %v1379 = vand.u32 %v1076, 4294901760
    %v1380 = vsub.f32 %v1076, %v1379
    %v1381 = vand.u32 %v1380, 4294901760
    %1382 = vmatpush1.xpose.msra.mxu0 %v1381
    %1383 = vmatprep.subr.mxu0 0.0
    %1384 = vmatpush1.xpose.msra.mxu0 0.0
    %1385 = vmatprep.subr.mxu0 0.0
    %1386 = vmatpush1.xpose.msra.mxu0 0.0
    %1387 = vmatprep.subr.mxu0 0.0
    %1388 = vmatpush1.xpose.msra.mxu0 0.0
    %1389 = vmatprep.subr.mxu0 0.0
    %1390 = vmatpush1.xpose.msra.mxu0 0.0
    %1391 = vmatprep.subr.mxu0 0.0
    %1392 = vmatpush1.xpose.msra.mxu0 0.0
    %1393 = vmatprep.subr.mxu0 0.0
    %1394 = vmatpush1.xpose.msra.mxu0 0.0
    %1395 = vmatprep.subr.mxu0 0.0
    %1396 = vmatpush1.xpose.msra.mxu0 0.0
    %1397 = vmatprep.subr.mxu0 0.0
    %1398 = vmatpush1.xpose.msra.mxu0 0.0
    %1399 = vmatprep.subr.mxu0 0.0
    %1400 = vmatpush1.xpose.msra.mxu0 0.0
    %1401 = vmatprep.subr.mxu0 0.0
    %1402 = vmatpush1.xpose.msra.mxu0 0.0
    %1403 = vmatprep.subr.mxu0 0.0
    %1404 = vmatpush1.xpose.msra.mxu0 0.0
    %1405 = vmatprep.subr.mxu0 0.0
    %1406 = vmatpush1.xpose.msra.mxu0 0.0
    %1407 = vmatprep.subr.mxu0 0.0
    %1408 = vmatpush1.xpose.msra.mxu0 0.0
    %1409 = vmatprep.subr.mxu0 0.0
    %1410 = vmatpush1.xpose.msra.mxu0 0.0
    %1411 = vmatprep.subr.mxu0 0.0
    %1412 = vmatpush1.xpose.msra.mxu0 0.0
    %1413 = vmatprep.subr.mxu0 0.0
    %1414 = vmatpush1.xpose.msra.mxu0 0.0
    %1415 = vmatprep.subr.mxu0 0.0
    %1416 = vmatpush1.xpose.msra.mxu0 0.0
    %1417 = vmatprep.subr.mxu0 0.0
    %1418 = vmatpush1.xpose.msra.mxu0 0.0
    %1419 = vmatprep.subr.mxu0 0.0
    %1420 = vmatpush1.xpose.msra.mxu0 0.0
    %1421 = vmatprep.subr.mxu0 0.0
    %1422 = vmatpush1.xpose.msra.mxu0 0.0
    %1423 = vmatprep.subr.mxu0 0.0
    %1424 = vmatpush1.xpose.msra.mxu0 0.0
    %1425 = vmatprep.subr.mxu0 0.0
    %1426 = vmatpush1.xpose.msra.mxu0 0.0
    %1427 = vmatprep.subr.mxu0 0.0
    %1428 = vmatpush1.xpose.msra.mxu0 0.0
    %1429 = vmatprep.subr.mxu0 0.0
    %1430 = vmatpush1.xpose.msra.mxu0 0.0
    %1431 = vmatprep.subr.mxu0 0.0
    %1432 = vmatpush1.xpose.msra.mxu0 0.0
    %1433 = vmatprep.subr.mxu0 0.0
    %1434 = vmatpush1.xpose.msra.mxu0 0.0
    %1435 = vmatprep.subr.mxu0 0.0
    %1436 = vmatpush1.xpose.msra.mxu0 0.0
    %1437 = vmatprep.subr.mxu0 0.0
    %1438 = vmatpush1.xpose.msra.mxu0 0.0
    %1439 = vmatprep.subr.mxu0 0.0
    %1440 = vmatpush1.xpose.msra.mxu0 0.0
    %1441 = vmatprep.subr.mxu0 0.0
    %1442 = vmatpush1.xpose.msra.mxu0 0.0
    %1443 = vmatprep.subr.mxu0 0.0
    %1444 = vmatpush1.xpose.msra.mxu0 0.0
    %1445 = vmatprep.mubr.f32.mxu0 0.0
    %v1446 = vand.u32 %v1076, 4294901760
    %1447 = vmatmul.mubr.f32.gmra.mrb[0].mxu0 %v1446
    %v1448 = vpop.f32.mrb[0].mxu0
    %v1449 = vadd.f32 %v1375, %v1448
    %v1450 = vpop.f32.mrb[0].mxu0
    %1451 = vdwg.mxu0
    %1452 = vmatprep.subr.mxu0 0.0
    %v1453 = vand.u32 %v1076, 4294901760
    %1454 = vmatpush1.xpose.msra.mxu0 %v1453
    %1455 = vmatprep.subr.mxu0 0.0
    %1456 = vmatpush1.xpose.msra.mxu0 0.0
    %1457 = vmatprep.subr.mxu0 0.0
    %1458 = vmatpush1.xpose.msra.mxu0 0.0
    %1459 = vmatprep.subr.mxu0 0.0
    %1460 = vmatpush1.xpose.msra.mxu0 0.0
    %1461 = vmatprep.subr.mxu0 0.0
    %1462 = vmatpush1.xpose.msra.mxu0 0.0
    %1463 = vmatprep.subr.mxu0 0.0
    %1464 = vmatpush1.xpose.msra.mxu0 0.0
    %1465 = vmatprep.subr.mxu0 0.0
    %1466 = vmatpush1.xpose.msra.mxu0 0.0
    %1467 = vmatprep.subr.mxu0 0.0
    %1468 = vmatpush1.xpose.msra.mxu0 0.0
    %1469 = vmatprep.subr.mxu0 0.0
    %1470 = vmatpush1.xpose.msra.mxu0 0.0
    %1471 = vmatprep.subr.mxu0 0.0
    %1472 = vmatpush1.xpose.msra.mxu0 0.0
    %1473 = vmatprep.subr.mxu0 0.0
    %1474 = vmatpush1.xpose.msra.mxu0 0.0
    %1475 = vmatprep.subr.mxu0 0.0
    %1476 = vmatpush1.xpose.msra.mxu0 0.0
    %1477 = vmatprep.subr.mxu0 0.0
    %1478 = vmatpush1.xpose.msra.mxu0 0.0
    %1479 = vmatprep.subr.mxu0 0.0
    %1480 = vmatpush1.xpose.msra.mxu0 0.0
    %1481 = vmatprep.subr.mxu0 0.0
    %1482 = vmatpush1.xpose.msra.mxu0 0.0
    %1483 = vmatprep.subr.mxu0 0.0
    %1484 = vmatpush1.xpose.msra.mxu0 0.0
    %1485 = vmatprep.subr.mxu0 0.0
    %1486 = vmatpush1.xpose.msra.mxu0 0.0
    %1487 = vmatprep.subr.mxu0 0.0
    %1488 = vmatpush1.xpose.msra.mxu0 0.0
    %1489 = vmatprep.subr.mxu0 0.0
    %1490 = vmatpush1.xpose.msra.mxu0 0.0
    %1491 = vmatprep.subr.mxu0 0.0
    %1492 = vmatpush1.xpose.msra.mxu0 0.0
    %1493 = vmatprep.subr.mxu0 0.0
    %1494 = vmatpush1.xpose.msra.mxu0 0.0
    %1495 = vmatprep.subr.mxu0 0.0
    %1496 = vmatpush1.xpose.msra.mxu0 0.0
    %1497 = vmatprep.subr.mxu0 0.0
    %1498 = vmatpush1.xpose.msra.mxu0 0.0
    %1499 = vmatprep.subr.mxu0 0.0
    %1500 = vmatpush1.xpose.msra.mxu0 0.0
    %1501 = vmatprep.subr.mxu0 0.0
    %1502 = vmatpush1.xpose.msra.mxu0 0.0
    %1503 = vmatprep.subr.mxu0 0.0
    %1504 = vmatpush1.xpose.msra.mxu0 0.0
    %1505 = vmatprep.subr.mxu0 0.0
    %1506 = vmatpush1.xpose.msra.mxu0 0.0
    %1507 = vmatprep.subr.mxu0 0.0
    %1508 = vmatpush1.xpose.msra.mxu0 0.0
    %1509 = vmatprep.subr.mxu0 0.0
    %1510 = vmatpush1.xpose.msra.mxu0 0.0
    %1511 = vmatprep.subr.mxu0 0.0
    %1512 = vmatpush1.xpose.msra.mxu0 0.0
    %1513 = vmatprep.subr.mxu0 0.0
    %1514 = vmatpush1.xpose.msra.mxu0 0.0
    %1515 = vmatprep.subr.mxu0 0.0
    %1516 = vmatpush1.xpose.msra.mxu0 0.0
    %1517 = vmatprep.mubr.f32.mxu0 0.0
    %v1518 = vand.u32 %v1076, 4294901760
    %1519 = vmatmul.mubr.f32.gmra.mrb[0].mxu0 %v1518
    %v1520 = vpop.f32.mrb[0].mxu0
    %v1521 = vadd.f32 %v1449, %v1520
    %v1522 = vpop.f32.mrb[0].mxu0
    %1523 = vdwg.mxu0
    %v1524 = vxor.u32 %v1072, 2147483648
    %v1525 = vxor.u32 %v1521, 2147483648
    %v1526 = vmul.f32 %v1524, 1.442695
    %v1527 = vpow.pop %v1526
    %v1528 = vmul.f32 %v1525, 1.442695
    %v1529 = vpow.pop %v1528
    %v1530 = vadd.f32 %v1527, 1.0
    %v1531 = vadd.f32 %v1529, 1.0
    %v1532 = vrcp.pop %v1530
    %v1533 = vmul.f32 1.0, %v1532
    %v1534 = vrcp.pop %v1531
    %v1535 = vmul.f32 1.0, %v1534
    %vm1536 = vcmask 64512
    %1537 = vst.msk [vmem:[#allocation9] sm:$0xff] %vm1536, %v1533
    %1538 = vst.msk [vmem:[#allocation9 + $0x8] sm:$0xff] %vm1536, %v1535
    // Predicated region
    $region30: #{tpu_custom_call.1} parent=1 // pred_check
      _
    $region31: #{tpu_custom_call.1} parent=1 // pred_check_branch
      %1540 = sbr.rel (0) target = $region33
    $region32: #{tpu_custom_call.1} parent=1 // pred_region
      %s1542 = ssub.s32 256, 256
      %1543 = vsyncadd [#allocation4], %s1542
      %s1544 = sshll.u32 [#allocation8], 4
      %s1545 = int_to_ptr.vmem [resolvable:$true] %s1544
      %1550 = dma.vmem_to_hbm [thread:$0]  %s1545, 256, %s4, [#allocation4], 128, 128, 8
    $region33: #{tpu_custom_call.1} parent=1 // pred_fallthru
      _
    // Predicated region
    $region34: #{tpu_custom_call.1} parent=1 // pred_check
      _
    $region35: #{tpu_custom_call.1} parent=1 // pred_check_branch
      %1552 = sbr.rel (0) target = $region37
    $region36: #{tpu_custom_call.1} parent=1 // pred_region
      %s1554 = ssub.s32 256, 256
      %1555 = vsyncadd [#allocation10], %s1554
      %s1556 = sshll.u32 [#allocation9], 4
      %s1557 = int_to_ptr.vmem [resolvable:$true] %s1556
      %1562 = dma.vmem_to_hbm [thread:$0]  %s1557, 256, %s5, [#allocation10], 128, 128, 8
    $region37: #{tpu_custom_call.1} parent=1 // pred_fallthru
      _
    // Predicated region
    $region38: #{tpu_custom_call.1} parent=1 // pred_check
      _
    $region39: #{tpu_custom_call.1} parent=1 // pred_check_branch
      %1564 = sbr.rel (0) target = $region41
    $region40: #{tpu_custom_call.1} parent=1 // pred_region
      %1565 = dma.done [#allocation4], 256
    $region41: #{tpu_custom_call.1} parent=1 // pred_fallthru
      _
    // Predicated region
    $region42: #{tpu_custom_call.1} parent=1 // pred_check
      _
    $region43: #{tpu_custom_call.1} parent=1 // pred_check_branch
      %1567 = sbr.rel (0) target = $region45
    $region44: #{tpu_custom_call.1} parent=1 // pred_region
      %1568 = dma.done [#allocation10], 256
    $region45: #{tpu_custom_call.1} parent=1 // pred_fallthru
      _
    %1569 = vsyncpa [#allocation3], 1
    %1570 = vsyncpa [#allocation6], 1
    %1571 = vsyncpa [#allocation4], 1
    %1572 = vsyncpa [#allocation10], 1

</llo_original>
